<compile_context>
chip_gen: v5e
topology: v5e:2x2
jax: 0.10.0
libtpu: 0.0.40
codegen_flags: <defaults>
</compile_context>

<pallas_src>
import math

import jax
import jax.numpy as jnp
from jax.experimental import pallas as pl
from jax.experimental.pallas import tpu as pltpu

# ---- small config consistent with the module ----
BATCH = 2
SEQ = 8
HIDDEN = 32
NUM_HEADS = 4
HEAD_DIM = HIDDEN // NUM_HEADS
INTERMEDIATE = 64
NUM_LAYERS = 2
LN_EPS = 1e-12
INIT_RANGE = 0.02

MASK_NEG = -1e9  # off-block additive mask; exp() underflows to exactly 0 in f32


def _layernorm(x, gamma, beta, eps):
    mean = jnp.mean(x, axis=-1, keepdims=True)
    var = jnp.mean(jnp.square(x - mean), axis=-1, keepdims=True)
    return (x - mean) * jax.lax.rsqrt(var + eps) * gamma + beta


def _gelu(x):
    # exact (erf-based) gelu, matching BERT's ACT2FN['gelu']
    return 0.5 * x * (1.0 + jax.lax.erf(x * (1.0 / math.sqrt(2.0))))


def _head_stack(qkv, col0):
    """[B*S, 3H] -> [B*NH*S, D]; rows ordered (b, h, s).  Static slices + sublane concat."""
    return jnp.concatenate(
        [qkv[b * SEQ:(b + 1) * SEQ,
             col0 + h * HEAD_DIM: col0 + (h + 1) * HEAD_DIM]
         for b in range(BATCH) for h in range(NUM_HEADS)],
        axis=0)


def _head_unstack(ctx_st):
    """[B*NH*S, D] -> [B*S, H]; inverse of _head_stack (torch's permute+view concat)."""
    per_batch = []
    for b in range(BATCH):
        per_batch.append(jnp.concatenate(
            [ctx_st[(b * NUM_HEADS + h) * SEQ:(b * NUM_HEADS + h + 1) * SEQ, :]
             for h in range(NUM_HEADS)],
            axis=1))
    return jnp.concatenate(per_batch, axis=0)


def bert_encoder_kernel(x_ref, mask_ref,
                        wqkv_ref, bqkv_ref, wo_ref, bo_ref, ln1_g_ref, ln1_b_ref,
                        wi_ref, bi_ref, wo2_ref, bo2_ref, ln2_g_ref, ln2_b_ref,
                        out_ref):
    """Full NUM_LAYERS-layer stack for the whole batch in one invocation.
    x_ref: [B*S, H]; mask_ref: [B*NH*S, B*NH*S] combined block-diag + key-pad mask.
    Weight refs are stacked over layers on their leading axis (resident in VMEM)."""
    H = HIDDEN

    x = x_ref[...]                       # [B*S, H], stays resident across all layers
    mask2d = mask_ref[...]               # [B*NH*S, B*NH*S], layer-invariant (hoisted)

    for l in range(NUM_LAYERS):          # static unroll (fine at L=2; see scaling TODO)
        # ---- BertSelfAttention: fused QKV projection over the whole batch ----
        # 1/sqrt(head_dim) is pre-folded into the Q columns of wqkv/bqkv.
        qkv = jnp.dot(x, wqkv_ref[l], preferred_element_type=jnp.float32) + bqkv_ref[l]

        # Stack all (batch, head) pairs on the sublane axis -> dense block-diag attention.
        q_st = _head_stack(qkv, 0)           # [B*NH*S, D]
        k_st = _head_stack(qkv, H)
        v_st = _head_stack(qkv, 2 * H)

        # scores = Q K^T without materializing a transpose (contract last dims).
        scores = jax.lax.dot_general(
            q_st, k_st, (((1,), (1,)), ((), ())),
            preferred_element_type=jnp.float32)          # [B*NH*S, B*NH*S]
        scores = scores + mask2d                          # key-pad + off-block kill
        scores = scores - jnp.max(scores, axis=-1, keepdims=True)
        p = jnp.exp(scores)                               # off-block entries -> exactly 0
        p = p * pl.reciprocal(jnp.sum(p, axis=-1, keepdims=True), approx=True)
        # dropout(p) and head_mask are identities in eval mode.

        ctx_st = jnp.dot(p, v_st, preferred_element_type=jnp.float32)   # [B*NH*S, D]
        ctx = _head_unstack(ctx_st)                                     # [B*S, H]

        # ---- BertSelfOutput: dense + residual + LayerNorm ----
        attn = jnp.dot(ctx, wo_ref[l], preferred_element_type=jnp.float32) + bo_ref[l]
        h1 = _layernorm(attn + x, ln1_g_ref[l], ln1_b_ref[l], LN_EPS)

        # ---- BertIntermediate (gelu) + BertOutput: dense + residual + LayerNorm ----
        inter = _gelu(jnp.dot(h1, wi_ref[l], preferred_element_type=jnp.float32) + bi_ref[l])
        ffn = jnp.dot(inter, wo2_ref[l], preferred_element_type=jnp.float32) + bo2_ref[l]
        x = _layernorm(ffn + h1, ln2_g_ref[l], ln2_b_ref[l], LN_EPS)

    # H=32 < 128 lanes -> masked store, but it's a one-time store; not worth densifying.
    out_ref[...] = x


def fold_attention_scale(stacked_params):
    """Fold 1/sqrt(head_dim) into the Q columns of the fused QKV weight and bias."""
    wqkv, bqkv, *rest = stacked_params
    scale = 1.0 / math.sqrt(HEAD_DIM)
    col_scale = jnp.concatenate([
        jnp.full((HIDDEN,), scale, jnp.float32),
        jnp.ones((2 * HIDDEN,), jnp.float32)])
    return (wqkv * col_scale, bqkv * col_scale, *rest)


def bert_encoder(hidden_states, attention_mask, stacked_params):
    """hidden_states: [B, S, H] f32; attention_mask: [B, S] (1 = keep, 0 = pad);
    stacked_params: tuple of 12 arrays, each with a leading NUM_LAYERS axis."""
    B, S, H = hidden_states.shape
    R = B * NUM_HEADS * S
    M = B * S

    # Combined additive mask for the block-diagonal attention, built once per call:
    #   same (batch, head) block -> standard BERT extended mask (1 - m) * -10000
    #   different block          -> -1e9 (cross-head / cross-batch attention killed)
    ext = (1.0 - attention_mask.astype(jnp.float32)) * -10000.0          # [B, S]
    key_cols = jnp.tile(ext[:, None, :], (1, NUM_HEADS, 1)).reshape(R)    # col -> pad val
    grp = jnp.arange(R) // S                                              # (b*NH + h)
    same = grp[:, None] == grp[None, :]
    mask2d = jnp.where(same, key_cols[None, :], jnp.float32(MASK_NEG))    # [R, R]

    folded = fold_attention_scale(stacked_params)
    x2 = hidden_states.reshape(M, H)

    vmem = pltpu.MemorySpace.VMEM
    out2 = pl.pallas_call(
        bert_encoder_kernel,
        out_shape=jax.ShapeDtypeStruct((M, H), jnp.float32),
        in_specs=[pl.BlockSpec(memory_space=vmem)] * (2 + len(folded)),
        out_specs=pl.BlockSpec(memory_space=vmem),
    )(x2, mask2d, *folded)
    return out2.reshape(B, S, H)


def init_layer_params(key):
    """Deterministic init mirroring init_weights(): Linear weights ~ N(0, 0.02),
    biases zero, LayerNorm weight=1, bias=0. Linear weights pre-transposed to [in, out];
    Q/K/V weights and biases fused along the output dim."""
    ks = jax.random.split(key, 6)

    def linear(k, out_f, in_f):
        w = jax.random.normal(k, (out_f, in_f), jnp.float32) * INIT_RANGE  # torch layout
        b = jnp.zeros((1, out_f), jnp.float32)
        return w.T, b  # pre-transposed to [in, out]

    wq, bq = linear(ks[0], HIDDEN, HIDDEN)
    wk, bk = linear(ks[1], HIDDEN, HIDDEN)
    wv, bv = linear(ks[2], HIDDEN, HIDDEN)
    wo, bo = linear(ks[3], HIDDEN, HIDDEN)
    ln1_g = jnp.ones((1, HIDDEN), jnp.float32)
    ln1_b = jnp.zeros((1, HIDDEN), jnp.float32)
    wi, bi = linear(ks[4], INTERMEDIATE, HIDDEN)
    wo2, bo2 = linear(ks[5], HIDDEN, INTERMEDIATE)
    ln2_g = jnp.ones((1, HIDDEN), jnp.float32)
    ln2_b = jnp.zeros((1, HIDDEN), jnp.float32)

    wqkv = jnp.concatenate([wq, wk, wv], axis=1)   # [H, 3H]
    bqkv = jnp.concatenate([bq, bk, bv], axis=1)   # [1, 3H]
    return (wqkv, bqkv, wo, bo, ln1_g, ln1_b, wi, bi, wo2, bo2, ln2_g, ln2_b)


def stack_layers(layer_params):
    """[(per-layer tuple), ...] -> tuple of arrays stacked on a leading layer axis."""
    return tuple(jnp.stack(ps, axis=0) for ps in zip(*layer_params))


def _reference_encoder(x, attention_mask, layer_params):
    """Pure-JAX reference (same math as the PyTorch module, no Pallas, no scale folding)."""
    ext = ((1.0 - attention_mask.astype(jnp.float32)) * -10000.0)[:, None, None, :]
    B, S, H = x.shape
    for (wqkv, bqkv, wo, bo, g1, b1, wi, bi, wo2, bo2, g2, b2) in layer_params:
        qkv = jnp.einsum('bsh,hk->bsk', x, wqkv, precision='highest') + bqkv[0]
        q, k, v = qkv[..., :H], qkv[..., H:2 * H], qkv[..., 2 * H:]

        def split(t):
            return t.reshape(B, S, NUM_HEADS, HEAD_DIM).transpose(0, 2, 1, 3)

        qh, kh, vh = split(q), split(k), split(v)
        sc = jnp.einsum('bnqd,bnkd->bnqk', qh, kh, precision='highest') / math.sqrt(HEAD_DIM)
        p = jax.nn.softmax(sc + ext, axis=-1)
        ctx = jnp.einsum('bnqk,bnkd->bnqd', p, vh, precision='highest')
        ctx = ctx.transpose(0, 2, 1, 3).reshape(B, S, H)
        attn = jnp.einsum('bsh,hk->bsk', ctx, wo, precision='highest') + bo[0]
        h1 = _layernorm(attn + x, g1[0], b1[0], LN_EPS)
        inter = _gelu(jnp.einsum('bsh,hi->bsi', h1, wi, precision='highest') + bi[0])
        ffn = jnp.einsum('bsi,ih->bsh', inter, wo2, precision='highest') + bo2[0]
        x = _layernorm(ffn + h1, g2[0], b2[0], LN_EPS)
    return x


if __name__ == "__main__":
    root = jax.random.PRNGKey(0)
    k_x, *k_layers = jax.random.split(root, NUM_LAYERS + 1)

    hidden_states = jax.random.normal(k_x, (BATCH, SEQ, HIDDEN), jnp.float32)
    attention_mask = jnp.ones((BATCH, SEQ), jnp.float32).at[1, -2:].set(0.0)

    layer_params = [init_layer_params(k) for k in k_layers]
    stacked_params = stack_layers(layer_params)

    out = bert_encoder(hidden_states, attention_mask, stacked_params)
    out = jax.block_until_ready(out)
    assert out.shape == (BATCH, SEQ, HIDDEN)

    ref = _reference_encoder(hidden_states, attention_mask, layer_params)
    assert jnp.allclose(out, ref, atol=1e-2, rtol=1e-2), float(jnp.max(jnp.abs(out - ref)))

    print("KERNEL_OK")
</pallas_src>

<mosaic_0001>
module attributes {stable_mosaic.version = 11 : i64} {
  func.func @bert_encoder_kernel(%arg0: memref<16x32xf32, #tpu.memory_space<vmem>>, %arg1: memref<64x64xf32, #tpu.memory_space<vmem>>, %arg2: memref<2x32x96xf32, #tpu.memory_space<vmem>>, %arg3: memref<2x1x96xf32, #tpu.memory_space<vmem>>, %arg4: memref<2x32x32xf32, #tpu.memory_space<vmem>>, %arg5: memref<2x1x32xf32, #tpu.memory_space<vmem>>, %arg6: memref<2x1x32xf32, #tpu.memory_space<vmem>>, %arg7: memref<2x1x32xf32, #tpu.memory_space<vmem>>, %arg8: memref<2x32x64xf32, #tpu.memory_space<vmem>>, %arg9: memref<2x1x64xf32, #tpu.memory_space<vmem>>, %arg10: memref<2x64x32xf32, #tpu.memory_space<vmem>>, %arg11: memref<2x1x32xf32, #tpu.memory_space<vmem>>, %arg12: memref<2x1x32xf32, #tpu.memory_space<vmem>>, %arg13: memref<2x1x32xf32, #tpu.memory_space<vmem>>, %arg14: memref<16x32xf32, #tpu.memory_space<vmem>>) attributes {dimension_semantics = [], scalar_prefetch = 0 : i64, scratch_operands = 0 : i64, tpu.core_type = #tpu.core_type<tc>} {
    %c0 = arith.constant 0 : index
    %c0_0 = arith.constant 0 : index
    %0 = vector.load %arg0[%c0, %c0_0] : memref<16x32xf32, #tpu.memory_space<vmem>>, vector<16x32xf32>
    %c0_1 = arith.constant 0 : index
    %c0_2 = arith.constant 0 : index
    %1 = vector.load %arg1[%c0_1, %c0_2] : memref<64x64xf32, #tpu.memory_space<vmem>>, vector<64x64xf32>
    %c0_3 = arith.constant 0 : index
    %c0_4 = arith.constant 0 : index
    %c0_5 = arith.constant 0 : index
    %2 = vector.load %arg2[%c0_3, %c0_4, %c0_5] : memref<2x32x96xf32, #tpu.memory_space<vmem>>, vector<1x32x96xf32>
    %3 = vector.shape_cast %2 : vector<1x32x96xf32> to vector<32x96xf32>
    %cst = arith.constant dense<0.000000e+00> : vector<16x96xf32>
    %4 = tpu.matmul %0, %3, %cst {dimension_numbers = #tpu.dot_dimension_numbers<[1], [0], [0], [1], [0, 0, 1, 1], [], []>} : vector<16x32xf32>, vector<32x96xf32>, vector<16x96xf32> -> vector<16x96xf32>
    %c0_6 = arith.constant 0 : index
    %c0_7 = arith.constant 0 : index
    %c0_8 = arith.constant 0 : index
    %5 = vector.load %arg3[%c0_6, %c0_7, %c0_8] : memref<2x1x96xf32, #tpu.memory_space<vmem>>, vector<1x1x96xf32>
    %6 = vector.shape_cast %5 : vector<1x1x96xf32> to vector<1x96xf32>
    %7 = vector.broadcast %6 : vector<1x96xf32> to vector<16x96xf32>
    %8 = arith.addf %4, %7 : vector<16x96xf32>
    %9 = vector.extract_strided_slice %8 {offsets = [0, 0], sizes = [8, 8], strides = [1, 1]} : vector<16x96xf32> to vector<8x8xf32>
    %10 = vector.extract_strided_slice %8 {offsets = [0, 8], sizes = [8, 8], strides = [1, 1]} : vector<16x96xf32> to vector<8x8xf32>
    %11 = vector.extract_strided_slice %8 {offsets = [0, 16], sizes = [8, 8], strides = [1, 1]} : vector<16x96xf32> to vector<8x8xf32>
    %12 = vector.extract_strided_slice %8 {offsets = [0, 24], sizes = [8, 8], strides = [1, 1]} : vector<16x96xf32> to vector<8x8xf32>
    %13 = vector.extract_strided_slice %8 {offsets = [8, 0], sizes = [8, 8], strides = [1, 1]} : vector<16x96xf32> to vector<8x8xf32>
    %14 = vector.extract_strided_slice %8 {offsets = [8, 8], sizes = [8, 8], strides = [1, 1]} : vector<16x96xf32> to vector<8x8xf32>
    %15 = vector.extract_strided_slice %8 {offsets = [8, 16], sizes = [8, 8], strides = [1, 1]} : vector<16x96xf32> to vector<8x8xf32>
    %16 = vector.extract_strided_slice %8 {offsets = [8, 24], sizes = [8, 8], strides = [1, 1]} : vector<16x96xf32> to vector<8x8xf32>
    %17 = tpu.concatenate %9, %10, %11, %12, %13, %14, %15, %16 in 0 : vector<8x8xf32>, vector<8x8xf32>, vector<8x8xf32>, vector<8x8xf32>, vector<8x8xf32>, vector<8x8xf32>, vector<8x8xf32>, vector<8x8xf32> -> vector<64x8xf32>
    %18 = vector.extract_strided_slice %8 {offsets = [0, 32], sizes = [8, 8], strides = [1, 1]} : vector<16x96xf32> to vector<8x8xf32>
    %19 = vector.extract_strided_slice %8 {offsets = [0, 40], sizes = [8, 8], strides = [1, 1]} : vector<16x96xf32> to vector<8x8xf32>
    %20 = vector.extract_strided_slice %8 {offsets = [0, 48], sizes = [8, 8], strides = [1, 1]} : vector<16x96xf32> to vector<8x8xf32>
    %21 = vector.extract_strided_slice %8 {offsets = [0, 56], sizes = [8, 8], strides = [1, 1]} : vector<16x96xf32> to vector<8x8xf32>
    %22 = vector.extract_strided_slice %8 {offsets = [8, 32], sizes = [8, 8], strides = [1, 1]} : vector<16x96xf32> to vector<8x8xf32>
    %23 = vector.extract_strided_slice %8 {offsets = [8, 40], sizes = [8, 8], strides = [1, 1]} : vector<16x96xf32> to vector<8x8xf32>
    %24 = vector.extract_strided_slice %8 {offsets = [8, 48], sizes = [8, 8], strides = [1, 1]} : vector<16x96xf32> to vector<8x8xf32>
    %25 = vector.extract_strided_slice %8 {offsets = [8, 56], sizes = [8, 8], strides = [1, 1]} : vector<16x96xf32> to vector<8x8xf32>
    %26 = tpu.concatenate %18, %19, %20, %21, %22, %23, %24, %25 in 0 : vector<8x8xf32>, vector<8x8xf32>, vector<8x8xf32>, vector<8x8xf32>, vector<8x8xf32>, vector<8x8xf32>, vector<8x8xf32>, vector<8x8xf32> -> vector<64x8xf32>
    %27 = vector.extract_strided_slice %8 {offsets = [0, 64], sizes = [8, 8], strides = [1, 1]} : vector<16x96xf32> to vector<8x8xf32>
    %28 = vector.extract_strided_slice %8 {offsets = [0, 72], sizes = [8, 8], strides = [1, 1]} : vector<16x96xf32> to vector<8x8xf32>
    %29 = vector.extract_strided_slice %8 {offsets = [0, 80], sizes = [8, 8], strides = [1, 1]} : vector<16x96xf32> to vector<8x8xf32>
    %30 = vector.extract_strided_slice %8 {offsets = [0, 88], sizes = [8, 8], strides = [1, 1]} : vector<16x96xf32> to vector<8x8xf32>
    %31 = vector.extract_strided_slice %8 {offsets = [8, 64], sizes = [8, 8], strides = [1, 1]} : vector<16x96xf32> to vector<8x8xf32>
    %32 = vector.extract_strided_slice %8 {offsets = [8, 72], sizes = [8, 8], strides = [1, 1]} : vector<16x96xf32> to vector<8x8xf32>
    %33 = vector.extract_strided_slice %8 {offsets = [8, 80], sizes = [8, 8], strides = [1, 1]} : vector<16x96xf32> to vector<8x8xf32>
    %34 = vector.extract_strided_slice %8 {offsets = [8, 88], sizes = [8, 8], strides = [1, 1]} : vector<16x96xf32> to vector<8x8xf32>
    %35 = tpu.concatenate %27, %28, %29, %30, %31, %32, %33, %34 in 0 : vector<8x8xf32>, vector<8x8xf32>, vector<8x8xf32>, vector<8x8xf32>, vector<8x8xf32>, vector<8x8xf32>, vector<8x8xf32>, vector<8x8xf32> -> vector<64x8xf32>
    %cst_9 = arith.constant dense<0.000000e+00> : vector<64x64xf32>
    %36 = tpu.matmul %17, %26, %cst_9 {dimension_numbers = #tpu.dot_dimension_numbers<[1], [1], [0], [0], [0, 0, 1, 0], [], []>} : vector<64x8xf32>, vector<64x8xf32>, vector<64x64xf32> -> vector<64x64xf32>
    %37 = arith.addf %36, %1 : vector<64x64xf32>
    %cst_10 = arith.constant dense<0xFF800000> : vector<64xf32>
    %38 = vector.multi_reduction <maximumf>, %37, %cst_10 [1] : vector<64x64xf32> to vector<64xf32>
    %39 = vector.shape_cast %38 : vector<64xf32> to vector<64x1xf32>
    %40 = vector.broadcast %39 : vector<64x1xf32> to vector<64x64xf32>
    %41 = arith.subf %37, %40 : vector<64x64xf32>
    %42 = math.exp %41 : vector<64x64xf32>
    %cst_11 = arith.constant dense<0.000000e+00> : vector<64xf32>
    %43 = vector.multi_reduction <add>, %42, %cst_11 [1] : vector<64x64xf32> to vector<64xf32>
    %44 = vector.shape_cast %43 : vector<64xf32> to vector<64x1xf32>
    %45 = tpu.reciprocal %44 {approx = true} : vector<64x1xf32> -> vector<64x1xf32>
    %46 = vector.broadcast %45 : vector<64x1xf32> to vector<64x64xf32>
    %47 = arith.mulf %42, %46 : vector<64x64xf32>
    %cst_12 = arith.constant dense<0.000000e+00> : vector<64x8xf32>
    %48 = tpu.matmul %47, %35, %cst_12 {dimension_numbers = #tpu.dot_dimension_numbers<[1], [0], [0], [1], [0, 0, 1, 1], [], []>} : vector<64x64xf32>, vector<64x8xf32>, vector<64x8xf32> -> vector<64x8xf32>
    %49 = vector.extract_strided_slice %48 {offsets = [0, 0], sizes = [8, 8], strides = [1, 1]} : vector<64x8xf32> to vector<8x8xf32>
    %50 = vector.extract_strided_slice %48 {offsets = [8, 0], sizes = [8, 8], strides = [1, 1]} : vector<64x8xf32> to vector<8x8xf32>
    %51 = vector.extract_strided_slice %48 {offsets = [16, 0], sizes = [8, 8], strides = [1, 1]} : vector<64x8xf32> to vector<8x8xf32>
    %52 = vector.extract_strided_slice %48 {offsets = [24, 0], sizes = [8, 8], strides = [1, 1]} : vector<64x8xf32> to vector<8x8xf32>
    %53 = tpu.concatenate %49, %50, %51, %52 in 1 : vector<8x8xf32>, vector<8x8xf32>, vector<8x8xf32>, vector<8x8xf32> -> vector<8x32xf32>
    %54 = vector.extract_strided_slice %48 {offsets = [32, 0], sizes = [8, 8], strides = [1, 1]} : vector<64x8xf32> to vector<8x8xf32>
    %55 = vector.extract_strided_slice %48 {offsets = [40, 0], sizes = [8, 8], strides = [1, 1]} : vector<64x8xf32> to vector<8x8xf32>
    %56 = vector.extract_strided_slice %48 {offsets = [48, 0], sizes = [8, 8], strides = [1, 1]} : vector<64x8xf32> to vector<8x8xf32>
    %57 = vector.extract_strided_slice %48 {offsets = [56, 0], sizes = [8, 8], strides = [1, 1]} : vector<64x8xf32> to vector<8x8xf32>
    %58 = tpu.concatenate %54, %55, %56, %57 in 1 : vector<8x8xf32>, vector<8x8xf32>, vector<8x8xf32>, vector<8x8xf32> -> vector<8x32xf32>
    %59 = tpu.concatenate %53, %58 in 0 : vector<8x32xf32>, vector<8x32xf32> -> vector<16x32xf32>
    %c0_13 = arith.constant 0 : index
    %c0_14 = arith.constant 0 : index
    %c0_15 = arith.constant 0 : index
    %60 = vector.load %arg4[%c0_13, %c0_14, %c0_15] : memref<2x32x32xf32, #tpu.memory_space<vmem>>, vector<1x32x32xf32>
    %61 = vector.shape_cast %60 : vector<1x32x32xf32> to vector<32x32xf32>
    %cst_16 = arith.constant dense<0.000000e+00> : vector<16x32xf32>
    %62 = tpu.matmul %59, %61, %cst_16 {dimension_numbers = #tpu.dot_dimension_numbers<[1], [0], [0], [1], [0, 0, 1, 1], [], []>} : vector<16x32xf32>, vector<32x32xf32>, vector<16x32xf32> -> vector<16x32xf32>
    %c0_17 = arith.constant 0 : index
    %c0_18 = arith.constant 0 : index
    %c0_19 = arith.constant 0 : index
    %63 = vector.load %arg5[%c0_17, %c0_18, %c0_19] : memref<2x1x32xf32, #tpu.memory_space<vmem>>, vector<1x1x32xf32>
    %64 = vector.shape_cast %63 : vector<1x1x32xf32> to vector<1x32xf32>
    %65 = vector.broadcast %64 : vector<1x32xf32> to vector<16x32xf32>
    %66 = arith.addf %62, %65 : vector<16x32xf32>
    %67 = arith.addf %66, %0 : vector<16x32xf32>
    %c0_20 = arith.constant 0 : index
    %c0_21 = arith.constant 0 : index
    %c0_22 = arith.constant 0 : index
    %68 = vector.load %arg6[%c0_20, %c0_21, %c0_22] : memref<2x1x32xf32, #tpu.memory_space<vmem>>, vector<1x1x32xf32>
    %69 = vector.shape_cast %68 : vector<1x1x32xf32> to vector<1x32xf32>
    %c0_23 = arith.constant 0 : index
    %c0_24 = arith.constant 0 : index
    %c0_25 = arith.constant 0 : index
    %70 = vector.load %arg7[%c0_23, %c0_24, %c0_25] : memref<2x1x32xf32, #tpu.memory_space<vmem>>, vector<1x1x32xf32>
    %71 = vector.shape_cast %70 : vector<1x1x32xf32> to vector<1x32xf32>
    %cst_26 = arith.constant dense<0.000000e+00> : vector<16xf32>
    %72 = vector.multi_reduction <add>, %67, %cst_26 [1] : vector<16x32xf32> to vector<16xf32>
    %73 = vector.shape_cast %72 : vector<16xf32> to vector<16x1xf32>
    %cst_27 = arith.constant 3.200000e+01 : f32
    %74 = vector.broadcast %cst_27 : f32 to vector<16x1xf32>
    %75 = arith.divf %73, %74 : vector<16x1xf32>
    %76 = vector.broadcast %75 : vector<16x1xf32> to vector<16x32xf32>
    %77 = arith.subf %67, %76 : vector<16x32xf32>
    %78 = arith.mulf %77, %77 : vector<16x32xf32>
    %cst_28 = arith.constant dense<0.000000e+00> : vector<16xf32>
    %79 = vector.multi_reduction <add>, %78, %cst_28 [1] : vector<16x32xf32> to vector<16xf32>
    %80 = vector.shape_cast %79 : vector<16xf32> to vector<16x1xf32>
    %cst_29 = arith.constant 3.200000e+01 : f32
    %81 = vector.broadcast %cst_29 : f32 to vector<16x1xf32>
    %82 = arith.divf %80, %81 : vector<16x1xf32>
    %83 = vector.broadcast %75 : vector<16x1xf32> to vector<16x32xf32>
    %84 = arith.subf %67, %83 : vector<16x32xf32>
    %cst_30 = arith.constant 9.99999996E-13 : f32
    %85 = vector.broadcast %cst_30 : f32 to vector<16x1xf32>
    %86 = arith.addf %82, %85 : vector<16x1xf32>
    %87 = math.rsqrt %86 : vector<16x1xf32>
    %88 = vector.broadcast %87 : vector<16x1xf32> to vector<16x32xf32>
    %89 = arith.mulf %84, %88 : vector<16x32xf32>
    %90 = vector.broadcast %69 : vector<1x32xf32> to vector<16x32xf32>
    %91 = arith.mulf %89, %90 : vector<16x32xf32>
    %92 = vector.broadcast %71 : vector<1x32xf32> to vector<16x32xf32>
    %93 = arith.addf %91, %92 : vector<16x32xf32>
    %c0_31 = arith.constant 0 : index
    %c0_32 = arith.constant 0 : index
    %c0_33 = arith.constant 0 : index
    %94 = vector.load %arg8[%c0_31, %c0_32, %c0_33] : memref<2x32x64xf32, #tpu.memory_space<vmem>>, vector<1x32x64xf32>
    %95 = vector.shape_cast %94 : vector<1x32x64xf32> to vector<32x64xf32>
    %cst_34 = arith.constant dense<0.000000e+00> : vector<16x64xf32>
    %96 = tpu.matmul %93, %95, %cst_34 {dimension_numbers = #tpu.dot_dimension_numbers<[1], [0], [0], [1], [0, 0, 1, 1], [], []>} : vector<16x32xf32>, vector<32x64xf32>, vector<16x64xf32> -> vector<16x64xf32>
    %c0_35 = arith.constant 0 : index
    %c0_36 = arith.constant 0 : index
    %c0_37 = arith.constant 0 : index
    %97 = vector.load %arg9[%c0_35, %c0_36, %c0_37] : memref<2x1x64xf32, #tpu.memory_space<vmem>>, vector<1x1x64xf32>
    %98 = vector.shape_cast %97 : vector<1x1x64xf32> to vector<1x64xf32>
    %99 = vector.broadcast %98 : vector<1x64xf32> to vector<16x64xf32>
    %100 = arith.addf %96, %99 : vector<16x64xf32>
    %cst_38 = arith.constant 5.000000e-01 : f32
    %101 = vector.broadcast %cst_38 : f32 to vector<16x64xf32>
    %102 = arith.mulf %101, %100 : vector<16x64xf32>
    %cst_39 = arith.constant 0.707106769 : f32
    %103 = vector.broadcast %cst_39 : f32 to vector<16x64xf32>
    %104 = arith.mulf %100, %103 : vector<16x64xf32>
    %105 = math.erf %104 : vector<16x64xf32>
    %cst_40 = arith.constant 1.000000e+00 : f32
    %106 = vector.broadcast %cst_40 : f32 to vector<16x64xf32>
    %107 = arith.addf %106, %105 : vector<16x64xf32>
    %108 = arith.mulf %102, %107 : vector<16x64xf32>
    %c0_41 = arith.constant 0 : index
    %c0_42 = arith.constant 0 : index
    %c0_43 = arith.constant 0 : index
    %109 = vector.load %arg10[%c0_41, %c0_42, %c0_43] : memref<2x64x32xf32, #tpu.memory_space<vmem>>, vector<1x64x32xf32>
    %110 = vector.shape_cast %109 : vector<1x64x32xf32> to vector<64x32xf32>
    %cst_44 = arith.constant dense<0.000000e+00> : vector<16x32xf32>
    %111 = tpu.matmul %108, %110, %cst_44 {dimension_numbers = #tpu.dot_dimension_numbers<[1], [0], [0], [1], [0, 0, 1, 1], [], []>} : vector<16x64xf32>, vector<64x32xf32>, vector<16x32xf32> -> vector<16x32xf32>
    %c0_45 = arith.constant 0 : index
    %c0_46 = arith.constant 0 : index
    %c0_47 = arith.constant 0 : index
    %112 = vector.load %arg11[%c0_45, %c0_46, %c0_47] : memref<2x1x32xf32, #tpu.memory_space<vmem>>, vector<1x1x32xf32>
    %113 = vector.shape_cast %112 : vector<1x1x32xf32> to vector<1x32xf32>
    %114 = vector.broadcast %113 : vector<1x32xf32> to vector<16x32xf32>
    %115 = arith.addf %111, %114 : vector<16x32xf32>
    %116 = arith.addf %115, %93 : vector<16x32xf32>
    %c0_48 = arith.constant 0 : index
    %c0_49 = arith.constant 0 : index
    %c0_50 = arith.constant 0 : index
    %117 = vector.load %arg12[%c0_48, %c0_49, %c0_50] : memref<2x1x32xf32, #tpu.memory_space<vmem>>, vector<1x1x32xf32>
    %118 = vector.shape_cast %117 : vector<1x1x32xf32> to vector<1x32xf32>
    %c0_51 = arith.constant 0 : index
    %c0_52 = arith.constant 0 : index
    %c0_53 = arith.constant 0 : index
    %119 = vector.load %arg13[%c0_51, %c0_52, %c0_53] : memref<2x1x32xf32, #tpu.memory_space<vmem>>, vector<1x1x32xf32>
    %120 = vector.shape_cast %119 : vector<1x1x32xf32> to vector<1x32xf32>
    %cst_54 = arith.constant dense<0.000000e+00> : vector<16xf32>
    %121 = vector.multi_reduction <add>, %116, %cst_54 [1] : vector<16x32xf32> to vector<16xf32>
    %122 = vector.shape_cast %121 : vector<16xf32> to vector<16x1xf32>
    %cst_55 = arith.constant 3.200000e+01 : f32
    %123 = vector.broadcast %cst_55 : f32 to vector<16x1xf32>
    %124 = arith.divf %122, %123 : vector<16x1xf32>
    %125 = vector.broadcast %124 : vector<16x1xf32> to vector<16x32xf32>
    %126 = arith.subf %116, %125 : vector<16x32xf32>
    %127 = arith.mulf %126, %126 : vector<16x32xf32>
    %cst_56 = arith.constant dense<0.000000e+00> : vector<16xf32>
    %128 = vector.multi_reduction <add>, %127, %cst_56 [1] : vector<16x32xf32> to vector<16xf32>
    %129 = vector.shape_cast %128 : vector<16xf32> to vector<16x1xf32>
    %cst_57 = arith.constant 3.200000e+01 : f32
    %130 = vector.broadcast %cst_57 : f32 to vector<16x1xf32>
    %131 = arith.divf %129, %130 : vector<16x1xf32>
    %132 = vector.broadcast %124 : vector<16x1xf32> to vector<16x32xf32>
    %133 = arith.subf %116, %132 : vector<16x32xf32>
    %cst_58 = arith.constant 9.99999996E-13 : f32
    %134 = vector.broadcast %cst_58 : f32 to vector<16x1xf32>
    %135 = arith.addf %131, %134 : vector<16x1xf32>
    %136 = math.rsqrt %135 : vector<16x1xf32>
    %137 = vector.broadcast %136 : vector<16x1xf32> to vector<16x32xf32>
    %138 = arith.mulf %133, %137 : vector<16x32xf32>
    %139 = vector.broadcast %118 : vector<1x32xf32> to vector<16x32xf32>
    %140 = arith.mulf %138, %139 : vector<16x32xf32>
    %141 = vector.broadcast %120 : vector<1x32xf32> to vector<16x32xf32>
    %142 = arith.addf %140, %141 : vector<16x32xf32>
    %c1 = arith.constant 1 : index
    %c0_59 = arith.constant 0 : index
    %c0_60 = arith.constant 0 : index
    %143 = vector.load %arg2[%c1, %c0_59, %c0_60] : memref<2x32x96xf32, #tpu.memory_space<vmem>>, vector<1x32x96xf32>
    %144 = vector.shape_cast %143 : vector<1x32x96xf32> to vector<32x96xf32>
    %cst_61 = arith.constant dense<0.000000e+00> : vector<16x96xf32>
    %145 = tpu.matmul %142, %144, %cst_61 {dimension_numbers = #tpu.dot_dimension_numbers<[1], [0], [0], [1], [0, 0, 1, 1], [], []>} : vector<16x32xf32>, vector<32x96xf32>, vector<16x96xf32> -> vector<16x96xf32>
    %c1_62 = arith.constant 1 : index
    %c0_63 = arith.constant 0 : index
    %c0_64 = arith.constant 0 : index
    %146 = vector.load %arg3[%c1_62, %c0_63, %c0_64] : memref<2x1x96xf32, #tpu.memory_space<vmem>>, vector<1x1x96xf32>
    %147 = vector.shape_cast %146 : vector<1x1x96xf32> to vector<1x96xf32>
    %148 = vector.broadcast %147 : vector<1x96xf32> to vector<16x96xf32>
    %149 = arith.addf %145, %148 : vector<16x96xf32>
    %150 = vector.extract_strided_slice %149 {offsets = [0, 0], sizes = [8, 8], strides = [1, 1]} : vector<16x96xf32> to vector<8x8xf32>
    %151 = vector.extract_strided_slice %149 {offsets = [0, 8], sizes = [8, 8], strides = [1, 1]} : vector<16x96xf32> to vector<8x8xf32>
    %152 = vector.extract_strided_slice %149 {offsets = [0, 16], sizes = [8, 8], strides = [1, 1]} : vector<16x96xf32> to vector<8x8xf32>
    %153 = vector.extract_strided_slice %149 {offsets = [0, 24], sizes = [8, 8], strides = [1, 1]} : vector<16x96xf32> to vector<8x8xf32>
    %154 = vector.extract_strided_slice %149 {offsets = [8, 0], sizes = [8, 8], strides = [1, 1]} : vector<16x96xf32> to vector<8x8xf32>
    %155 = vector.extract_strided_slice %149 {offsets = [8, 8], sizes = [8, 8], strides = [1, 1]} : vector<16x96xf32> to vector<8x8xf32>
    %156 = vector.extract_strided_slice %149 {offsets = [8, 16], sizes = [8, 8], strides = [1, 1]} : vector<16x96xf32> to vector<8x8xf32>
    %157 = vector.extract_strided_slice %149 {offsets = [8, 24], sizes = [8, 8], strides = [1, 1]} : vector<16x96xf32> to vector<8x8xf32>
    %158 = tpu.concatenate %150, %151, %152, %153, %154, %155, %156, %157 in 0 : vector<8x8xf32>, vector<8x8xf32>, vector<8x8xf32>, vector<8x8xf32>, vector<8x8xf32>, vector<8x8xf32>, vector<8x8xf32>, vector<8x8xf32> -> vector<64x8xf32>
    %159 = vector.extract_strided_slice %149 {offsets = [0, 32], sizes = [8, 8], strides = [1, 1]} : vector<16x96xf32> to vector<8x8xf32>
    %160 = vector.extract_strided_slice %149 {offsets = [0, 40], sizes = [8, 8], strides = [1, 1]} : vector<16x96xf32> to vector<8x8xf32>
    %161 = vector.extract_strided_slice %149 {offsets = [0, 48], sizes = [8, 8], strides = [1, 1]} : vector<16x96xf32> to vector<8x8xf32>
    %162 = vector.extract_strided_slice %149 {offsets = [0, 56], sizes = [8, 8], strides = [1, 1]} : vector<16x96xf32> to vector<8x8xf32>
    %163 = vector.extract_strided_slice %149 {offsets = [8, 32], sizes = [8, 8], strides = [1, 1]} : vector<16x96xf32> to vector<8x8xf32>
    %164 = vector.extract_strided_slice %149 {offsets = [8, 40], sizes = [8, 8], strides = [1, 1]} : vector<16x96xf32> to vector<8x8xf32>
    %165 = vector.extract_strided_slice %149 {offsets = [8, 48], sizes = [8, 8], strides = [1, 1]} : vector<16x96xf32> to vector<8x8xf32>
    %166 = vector.extract_strided_slice %149 {offsets = [8, 56], sizes = [8, 8], strides = [1, 1]} : vector<16x96xf32> to vector<8x8xf32>
    %167 = tpu.concatenate %159, %160, %161, %162, %163, %164, %165, %166 in 0 : vector<8x8xf32>, vector<8x8xf32>, vector<8x8xf32>, vector<8x8xf32>, vector<8x8xf32>, vector<8x8xf32>, vector<8x8xf32>, vector<8x8xf32> -> vector<64x8xf32>
    %168 = vector.extract_strided_slice %149 {offsets = [0, 64], sizes = [8, 8], strides = [1, 1]} : vector<16x96xf32> to vector<8x8xf32>
    %169 = vector.extract_strided_slice %149 {offsets = [0, 72], sizes = [8, 8], strides = [1, 1]} : vector<16x96xf32> to vector<8x8xf32>
    %170 = vector.extract_strided_slice %149 {offsets = [0, 80], sizes = [8, 8], strides = [1, 1]} : vector<16x96xf32> to vector<8x8xf32>
    %171 = vector.extract_strided_slice %149 {offsets = [0, 88], sizes = [8, 8], strides = [1, 1]} : vector<16x96xf32> to vector<8x8xf32>
    %172 = vector.extract_strided_slice %149 {offsets = [8, 64], sizes = [8, 8], strides = [1, 1]} : vector<16x96xf32> to vector<8x8xf32>
    %173 = vector.extract_strided_slice %149 {offsets = [8, 72], sizes = [8, 8], strides = [1, 1]} : vector<16x96xf32> to vector<8x8xf32>
    %174 = vector.extract_strided_slice %149 {offsets = [8, 80], sizes = [8, 8], strides = [1, 1]} : vector<16x96xf32> to vector<8x8xf32>
    %175 = vector.extract_strided_slice %149 {offsets = [8, 88], sizes = [8, 8], strides = [1, 1]} : vector<16x96xf32> to vector<8x8xf32>
    %176 = tpu.concatenate %168, %169, %170, %171, %172, %173, %174, %175 in 0 : vector<8x8xf32>, vector<8x8xf32>, vector<8x8xf32>, vector<8x8xf32>, vector<8x8xf32>, vector<8x8xf32>, vector<8x8xf32>, vector<8x8xf32> -> vector<64x8xf32>
    %cst_65 = arith.constant dense<0.000000e+00> : vector<64x64xf32>
    %177 = tpu.matmul %158, %167, %cst_65 {dimension_numbers = #tpu.dot_dimension_numbers<[1], [1], [0], [0], [0, 0, 1, 0], [], []>} : vector<64x8xf32>, vector<64x8xf32>, vector<64x64xf32> -> vector<64x64xf32>
    %178 = arith.addf %177, %1 : vector<64x64xf32>
    %cst_66 = arith.constant dense<0xFF800000> : vector<64xf32>
    %179 = vector.multi_reduction <maximumf>, %178, %cst_66 [1] : vector<64x64xf32> to vector<64xf32>
    %180 = vector.shape_cast %179 : vector<64xf32> to vector<64x1xf32>
    %181 = vector.broadcast %180 : vector<64x1xf32> to vector<64x64xf32>
    %182 = arith.subf %178, %181 : vector<64x64xf32>
    %183 = math.exp %182 : vector<64x64xf32>
    %cst_67 = arith.constant dense<0.000000e+00> : vector<64xf32>
    %184 = vector.multi_reduction <add>, %183, %cst_67 [1] : vector<64x64xf32> to vector<64xf32>
    %185 = vector.shape_cast %184 : vector<64xf32> to vector<64x1xf32>
    %186 = tpu.reciprocal %185 {approx = true} : vector<64x1xf32> -> vector<64x1xf32>
    %187 = vector.broadcast %186 : vector<64x1xf32> to vector<64x64xf32>
    %188 = arith.mulf %183, %187 : vector<64x64xf32>
    %cst_68 = arith.constant dense<0.000000e+00> : vector<64x8xf32>
    %189 = tpu.matmul %188, %176, %cst_68 {dimension_numbers = #tpu.dot_dimension_numbers<[1], [0], [0], [1], [0, 0, 1, 1], [], []>} : vector<64x64xf32>, vector<64x8xf32>, vector<64x8xf32> -> vector<64x8xf32>
    %190 = vector.extract_strided_slice %189 {offsets = [0, 0], sizes = [8, 8], strides = [1, 1]} : vector<64x8xf32> to vector<8x8xf32>
    %191 = vector.extract_strided_slice %189 {offsets = [8, 0], sizes = [8, 8], strides = [1, 1]} : vector<64x8xf32> to vector<8x8xf32>
    %192 = vector.extract_strided_slice %189 {offsets = [16, 0], sizes = [8, 8], strides = [1, 1]} : vector<64x8xf32> to vector<8x8xf32>
    %193 = vector.extract_strided_slice %189 {offsets = [24, 0], sizes = [8, 8], strides = [1, 1]} : vector<64x8xf32> to vector<8x8xf32>
    %194 = tpu.concatenate %190, %191, %192, %193 in 1 : vector<8x8xf32>, vector<8x8xf32>, vector<8x8xf32>, vector<8x8xf32> -> vector<8x32xf32>
    %195 = vector.extract_strided_slice %189 {offsets = [32, 0], sizes = [8, 8], strides = [1, 1]} : vector<64x8xf32> to vector<8x8xf32>
    %196 = vector.extract_strided_slice %189 {offsets = [40, 0], sizes = [8, 8], strides = [1, 1]} : vector<64x8xf32> to vector<8x8xf32>
    %197 = vector.extract_strided_slice %189 {offsets = [48, 0], sizes = [8, 8], strides = [1, 1]} : vector<64x8xf32> to vector<8x8xf32>
    %198 = vector.extract_strided_slice %189 {offsets = [56, 0], sizes = [8, 8], strides = [1, 1]} : vector<64x8xf32> to vector<8x8xf32>
    %199 = tpu.concatenate %195, %196, %197, %198 in 1 : vector<8x8xf32>, vector<8x8xf32>, vector<8x8xf32>, vector<8x8xf32> -> vector<8x32xf32>
    %200 = tpu.concatenate %194, %199 in 0 : vector<8x32xf32>, vector<8x32xf32> -> vector<16x32xf32>
    %c1_69 = arith.constant 1 : index
    %c0_70 = arith.constant 0 : index
    %c0_71 = arith.constant 0 : index
    %201 = vector.load %arg4[%c1_69, %c0_70, %c0_71] : memref<2x32x32xf32, #tpu.memory_space<vmem>>, vector<1x32x32xf32>
    %202 = vector.shape_cast %201 : vector<1x32x32xf32> to vector<32x32xf32>
    %cst_72 = arith.constant dense<0.000000e+00> : vector<16x32xf32>
    %203 = tpu.matmul %200, %202, %cst_72 {dimension_numbers = #tpu.dot_dimension_numbers<[1], [0], [0], [1], [0, 0, 1, 1], [], []>} : vector<16x32xf32>, vector<32x32xf32>, vector<16x32xf32> -> vector<16x32xf32>
    %c1_73 = arith.constant 1 : index
    %c0_74 = arith.constant 0 : index
    %c0_75 = arith.constant 0 : index
    %204 = vector.load %arg5[%c1_73, %c0_74, %c0_75] : memref<2x1x32xf32, #tpu.memory_space<vmem>>, vector<1x1x32xf32>
    %205 = vector.shape_cast %204 : vector<1x1x32xf32> to vector<1x32xf32>
    %206 = vector.broadcast %205 : vector<1x32xf32> to vector<16x32xf32>
    %207 = arith.addf %203, %206 : vector<16x32xf32>
    %208 = arith.addf %207, %142 : vector<16x32xf32>
    %c1_76 = arith.constant 1 : index
    %c0_77 = arith.constant 0 : index
    %c0_78 = arith.constant 0 : index
    %209 = vector.load %arg6[%c1_76, %c0_77, %c0_78] : memref<2x1x32xf32, #tpu.memory_space<vmem>>, vector<1x1x32xf32>
    %210 = vector.shape_cast %209 : vector<1x1x32xf32> to vector<1x32xf32>
    %c1_79 = arith.constant 1 : index
    %c0_80 = arith.constant 0 : index
    %c0_81 = arith.constant 0 : index
    %211 = vector.load %arg7[%c1_79, %c0_80, %c0_81] : memref<2x1x32xf32, #tpu.memory_space<vmem>>, vector<1x1x32xf32>
    %212 = vector.shape_cast %211 : vector<1x1x32xf32> to vector<1x32xf32>
    %cst_82 = arith.constant dense<0.000000e+00> : vector<16xf32>
    %213 = vector.multi_reduction <add>, %208, %cst_82 [1] : vector<16x32xf32> to vector<16xf32>
    %214 = vector.shape_cast %213 : vector<16xf32> to vector<16x1xf32>
    %cst_83 = arith.constant 3.200000e+01 : f32
    %215 = vector.broadcast %cst_83 : f32 to vector<16x1xf32>
    %216 = arith.divf %214, %215 : vector<16x1xf32>
    %217 = vector.broadcast %216 : vector<16x1xf32> to vector<16x32xf32>
    %218 = arith.subf %208, %217 : vector<16x32xf32>
    %219 = arith.mulf %218, %218 : vector<16x32xf32>
    %cst_84 = arith.constant dense<0.000000e+00> : vector<16xf32>
    %220 = vector.multi_reduction <add>, %219, %cst_84 [1] : vector<16x32xf32> to vector<16xf32>
    %221 = vector.shape_cast %220 : vector<16xf32> to vector<16x1xf32>
    %cst_85 = arith.constant 3.200000e+01 : f32
    %222 = vector.broadcast %cst_85 : f32 to vector<16x1xf32>
    %223 = arith.divf %221, %222 : vector<16x1xf32>
    %224 = vector.broadcast %216 : vector<16x1xf32> to vector<16x32xf32>
    %225 = arith.subf %208, %224 : vector<16x32xf32>
    %cst_86 = arith.constant 9.99999996E-13 : f32
    %226 = vector.broadcast %cst_86 : f32 to vector<16x1xf32>
    %227 = arith.addf %223, %226 : vector<16x1xf32>
    %228 = math.rsqrt %227 : vector<16x1xf32>
    %229 = vector.broadcast %228 : vector<16x1xf32> to vector<16x32xf32>
    %230 = arith.mulf %225, %229 : vector<16x32xf32>
    %231 = vector.broadcast %210 : vector<1x32xf32> to vector<16x32xf32>
    %232 = arith.mulf %230, %231 : vector<16x32xf32>
    %233 = vector.broadcast %212 : vector<1x32xf32> to vector<16x32xf32>
    %234 = arith.addf %232, %233 : vector<16x32xf32>
    %c1_87 = arith.constant 1 : index
    %c0_88 = arith.constant 0 : index
    %c0_89 = arith.constant 0 : index
    %235 = vector.load %arg8[%c1_87, %c0_88, %c0_89] : memref<2x32x64xf32, #tpu.memory_space<vmem>>, vector<1x32x64xf32>
    %236 = vector.shape_cast %235 : vector<1x32x64xf32> to vector<32x64xf32>
    %cst_90 = arith.constant dense<0.000000e+00> : vector<16x64xf32>
    %237 = tpu.matmul %234, %236, %cst_90 {dimension_numbers = #tpu.dot_dimension_numbers<[1], [0], [0], [1], [0, 0, 1, 1], [], []>} : vector<16x32xf32>, vector<32x64xf32>, vector<16x64xf32> -> vector<16x64xf32>
    %c1_91 = arith.constant 1 : index
    %c0_92 = arith.constant 0 : index
    %c0_93 = arith.constant 0 : index
    %238 = vector.load %arg9[%c1_91, %c0_92, %c0_93] : memref<2x1x64xf32, #tpu.memory_space<vmem>>, vector<1x1x64xf32>
    %239 = vector.shape_cast %238 : vector<1x1x64xf32> to vector<1x64xf32>
    %240 = vector.broadcast %239 : vector<1x64xf32> to vector<16x64xf32>
    %241 = arith.addf %237, %240 : vector<16x64xf32>
    %cst_94 = arith.constant 5.000000e-01 : f32
    %242 = vector.broadcast %cst_94 : f32 to vector<16x64xf32>
    %243 = arith.mulf %242, %241 : vector<16x64xf32>
    %cst_95 = arith.constant 0.707106769 : f32
    %244 = vector.broadcast %cst_95 : f32 to vector<16x64xf32>
    %245 = arith.mulf %241, %244 : vector<16x64xf32>
    %246 = math.erf %245 : vector<16x64xf32>
    %cst_96 = arith.constant 1.000000e+00 : f32
    %247 = vector.broadcast %cst_96 : f32 to vector<16x64xf32>
    %248 = arith.addf %247, %246 : vector<16x64xf32>
    %249 = arith.mulf %243, %248 : vector<16x64xf32>
    %c1_97 = arith.constant 1 : index
    %c0_98 = arith.constant 0 : index
    %c0_99 = arith.constant 0 : index
    %250 = vector.load %arg10[%c1_97, %c0_98, %c0_99] : memref<2x64x32xf32, #tpu.memory_space<vmem>>, vector<1x64x32xf32>
    %251 = vector.shape_cast %250 : vector<1x64x32xf32> to vector<64x32xf32>
    %cst_100 = arith.constant dense<0.000000e+00> : vector<16x32xf32>
    %252 = tpu.matmul %249, %251, %cst_100 {dimension_numbers = #tpu.dot_dimension_numbers<[1], [0], [0], [1], [0, 0, 1, 1], [], []>} : vector<16x64xf32>, vector<64x32xf32>, vector<16x32xf32> -> vector<16x32xf32>
    %c1_101 = arith.constant 1 : index
    %c0_102 = arith.constant 0 : index
    %c0_103 = arith.constant 0 : index
    %253 = vector.load %arg11[%c1_101, %c0_102, %c0_103] : memref<2x1x32xf32, #tpu.memory_space<vmem>>, vector<1x1x32xf32>
    %254 = vector.shape_cast %253 : vector<1x1x32xf32> to vector<1x32xf32>
    %255 = vector.broadcast %254 : vector<1x32xf32> to vector<16x32xf32>
    %256 = arith.addf %252, %255 : vector<16x32xf32>
    %257 = arith.addf %256, %234 : vector<16x32xf32>
    %c1_104 = arith.constant 1 : index
    %c0_105 = arith.constant 0 : index
    %c0_106 = arith.constant 0 : index
    %258 = vector.load %arg12[%c1_104, %c0_105, %c0_106] : memref<2x1x32xf32, #tpu.memory_space<vmem>>, vector<1x1x32xf32>
    %259 = vector.shape_cast %258 : vector<1x1x32xf32> to vector<1x32xf32>
    %c1_107 = arith.constant 1 : index
    %c0_108 = arith.constant 0 : index
    %c0_109 = arith.constant 0 : index
    %260 = vector.load %arg13[%c1_107, %c0_108, %c0_109] : memref<2x1x32xf32, #tpu.memory_space<vmem>>, vector<1x1x32xf32>
    %261 = vector.shape_cast %260 : vector<1x1x32xf32> to vector<1x32xf32>
    %cst_110 = arith.constant dense<0.000000e+00> : vector<16xf32>
    %262 = vector.multi_reduction <add>, %257, %cst_110 [1] : vector<16x32xf32> to vector<16xf32>
    %263 = vector.shape_cast %262 : vector<16xf32> to vector<16x1xf32>
    %cst_111 = arith.constant 3.200000e+01 : f32
    %264 = vector.broadcast %cst_111 : f32 to vector<16x1xf32>
    %265 = arith.divf %263, %264 : vector<16x1xf32>
    %266 = vector.broadcast %265 : vector<16x1xf32> to vector<16x32xf32>
    %267 = arith.subf %257, %266 : vector<16x32xf32>
    %268 = arith.mulf %267, %267 : vector<16x32xf32>
    %cst_112 = arith.constant dense<0.000000e+00> : vector<16xf32>
    %269 = vector.multi_reduction <add>, %268, %cst_112 [1] : vector<16x32xf32> to vector<16xf32>
    %270 = vector.shape_cast %269 : vector<16xf32> to vector<16x1xf32>
    %cst_113 = arith.constant 3.200000e+01 : f32
    %271 = vector.broadcast %cst_113 : f32 to vector<16x1xf32>
    %272 = arith.divf %270, %271 : vector<16x1xf32>
    %273 = vector.broadcast %265 : vector<16x1xf32> to vector<16x32xf32>
    %274 = arith.subf %257, %273 : vector<16x32xf32>
    %cst_114 = arith.constant 9.99999996E-13 : f32
    %275 = vector.broadcast %cst_114 : f32 to vector<16x1xf32>
    %276 = arith.addf %272, %275 : vector<16x1xf32>
    %277 = math.rsqrt %276 : vector<16x1xf32>
    %278 = vector.broadcast %277 : vector<16x1xf32> to vector<16x32xf32>
    %279 = arith.mulf %274, %278 : vector<16x32xf32>
    %280 = vector.broadcast %259 : vector<1x32xf32> to vector<16x32xf32>
    %281 = arith.mulf %279, %280 : vector<16x32xf32>
    %282 = vector.broadcast %261 : vector<1x32xf32> to vector<16x32xf32>
    %283 = arith.addf %281, %282 : vector<16x32xf32>
    %c0_115 = arith.constant 0 : index
    %c0_116 = arith.constant 0 : index
    %284 = vector.load %arg14[%c0_115, %c0_116] : memref<16x32xf32, #tpu.memory_space<vmem>>, vector<16x32xf32>
    tpu.vector_store %arg14[%c0_115, %c0_116], %283 {strides = array<i32>} : memref<16x32xf32, #tpu.memory_space<vmem>>, vector<16x32xf32>,
    return
  }
}

</mosaic_0001>

<llo_original>
// kernel: tpu_custom_call.1
$region0: #{tpu_custom_call.1}
  #allocation0 [shape = 'u32[]', space=smem, size = 0x4, offset = 0x4, fixed_abs, tag = 'smem constant byte address 0x4 - core index']
  #allocation1 [shape = 'u32[72,128]{1,0:T(1,128)}', space=vmem, size = 0x9000, scoped, tag = 'internal scratch']
  %s0 = inlined_call_operand.hbm [shape: f32[16,32], index: 0, kind: input, shape index: {}]
  %s1 = inlined_call_operand.vmem [shape: f32[64,64], index: 1, kind: input, shape index: {}]
  %s2 = inlined_call_operand.vmem [shape: f32[2,32,96], index: 2, kind: input, shape index: {}]
  %s3 = inlined_call_operand.vmem [shape: f32[2,1,96], index: 3, kind: input, shape index: {}]
  %s4 = inlined_call_operand.vmem [shape: f32[2,32,32], index: 4, kind: input, shape index: {}]
  %s5 = inlined_call_operand.hbm [shape: f32[2,1,32], index: 5, kind: input, shape index: {}]
  %s6 = inlined_call_operand.vmem [shape: f32[2,1,32], index: 6, kind: input, shape index: {}]
  %s7 = inlined_call_operand.hbm [shape: f32[2,1,32], index: 7, kind: input, shape index: {}]
  %s8 = inlined_call_operand.hbm [shape: f32[2,32,64], index: 8, kind: input, shape index: {}]
  %s9 = inlined_call_operand.vmem [shape: f32[2,1,64], index: 9, kind: input, shape index: {}]
  %s10 = inlined_call_operand.vmem [shape: f32[2,64,32], index: 10, kind: input, shape index: {}]
  %s11 = inlined_call_operand.vmem [shape: f32[2,1,32], index: 11, kind: input, shape index: {}]
  %s12 = inlined_call_operand.vmem [shape: f32[2,1,32], index: 12, kind: input, shape index: {}]
  %s13 = inlined_call_operand.hbm [shape: f32[2,1,32], index: 13, kind: input, shape index: {}]
  %s14 = inlined_call_operand.hbm [shape: f32[16,32], index: 14, kind: output, shape index: {}]
  %s15 = sld [smem:[#allocation0]]
  $region86: #{tpu_custom_call.1} parent=0
    _
  %s17 = ssub.s32 1, %s15
  %s18 = scalar_select 0, %s17, %s15
  $region1: #{tpu_custom_call.1} parent=0
    #allocation2 [shape = 'u8[8192]{0}', space=vmem, size = 0x2000, scoped, tag = 'input window, operand 0, single buffered']
    #allocation3 [shape = 's32[1]{0}', space=sflag, size = 0x4, scoped, tag = 'scoped memory for tpu_custom_call.1']
    #allocation4 [shape = 's32[1]{0}', space=sflag, size = 0x4, scoped, tag = 'scoped memory for tpu_custom_call.1']
    #allocation5 [shape = 'u8[1024]{0}', space=vmem, size = 0x400, scoped, tag = 'input window, operand 5, single buffered']
    #allocation6 [shape = 's32[1]{0}', space=sflag, size = 0x4, scoped, tag = 'scoped memory for tpu_custom_call.1']
    #allocation7 [shape = 'u8[1024]{0}', space=vmem, size = 0x400, scoped, tag = 'input window, operand 7, single buffered']
    #allocation8 [shape = 'u8[32768]{0}', space=vmem, size = 0x8000, scoped, tag = 'input window, operand 8, single buffered']
    #allocation9 [shape = 's32[1]{0}', space=sflag, size = 0x4, scoped, tag = 'scoped memory for tpu_custom_call.1']
    #allocation10 [shape = 'u8[1024]{0}', space=vmem, size = 0x400, scoped, tag = 'input window, operand 13, single buffered']
    #allocation11 [shape = 'u8[8192]{0}', space=vmem, size = 0x2000, scoped, tag = 'output window, operand 0, single buffered']
    %19 = vsyncpa [#allocation3], 0
    %20 = vsyncpa [#allocation6], 0
    %21 = vsyncpa [#allocation9], 0
    %22 = vsyncpa [#allocation4], 0
    // Predicated region
    $region2: #{tpu_custom_call.1} parent=1 // pred_check
      _
    $region3: #{tpu_custom_call.1} parent=1 // pred_check_branch
      %24 = sbr.rel (0) target = $region5
    $region4: #{tpu_custom_call.1} parent=1 // pred_region
      %26 = vsyncadd [#allocation3], 0
      %s27 = sshll.u32 %s0, 4
      %s28 = int_to_ptr.hbm [resolvable:$true] %s27
      %s29 = sshll.u32 [#allocation2], 4
      %s30 = int_to_ptr.vmem [resolvable:$true] %s29
      %35 = dma.hbm_to_vmem [thread:$0]  %s28, 256, %s30, [#allocation3], 128, 128, 8
    $region5: #{tpu_custom_call.1} parent=1 // pred_fallthru
      _
    // Predicated region
    $region6: #{tpu_custom_call.1} parent=1 // pred_check
      _
    $region7: #{tpu_custom_call.1} parent=1 // pred_check_branch
      %37 = sbr.rel (0) target = $region9
    $region8: #{tpu_custom_call.1} parent=1 // pred_region
      _
    $region9: #{tpu_custom_call.1} parent=1 // pred_fallthru
      _
    // Predicated region
    $region10: #{tpu_custom_call.1} parent=1 // pred_check
      _
    $region11: #{tpu_custom_call.1} parent=1 // pred_check_branch
      %39 = sbr.rel (0) target = $region13
    $region12: #{tpu_custom_call.1} parent=1 // pred_region
      _
    $region13: #{tpu_custom_call.1} parent=1 // pred_fallthru
      _
    // Predicated region
    $region14: #{tpu_custom_call.1} parent=1 // pred_check
      _
    $region15: #{tpu_custom_call.1} parent=1 // pred_check_branch
      %41 = sbr.rel (0) target = $region17
    $region16: #{tpu_custom_call.1} parent=1 // pred_region
      _
    $region17: #{tpu_custom_call.1} parent=1 // pred_fallthru
      _
    // Predicated region
    $region18: #{tpu_custom_call.1} parent=1 // pred_check
      _
    $region19: #{tpu_custom_call.1} parent=1 // pred_check_branch
      %43 = sbr.rel (0) target = $region21
    $region20: #{tpu_custom_call.1} parent=1 // pred_region
      _
    $region21: #{tpu_custom_call.1} parent=1 // pred_fallthru
      _
    // Predicated region
    $region22: #{tpu_custom_call.1} parent=1 // pred_check
      _
    $region23: #{tpu_custom_call.1} parent=1 // pred_check_branch
      %45 = sbr.rel (0) target = $region25
    $region24: #{tpu_custom_call.1} parent=1 // pred_region
      %47 = vsyncadd [#allocation6], 0
      %s48 = sshll.u32 %s5, 4
      %s49 = int_to_ptr.hbm [resolvable:$true] %s48
      %s50 = sshll.u32 [#allocation5], 4
      %s51 = int_to_ptr.vmem [resolvable:$true] %s50
      %56 = dma.hbm_to_vmem [thread:$0]  %s49, 32, %s51, [#allocation6], 16, 16, 1
    $region25: #{tpu_custom_call.1} parent=1 // pred_fallthru
      _
    // Predicated region
    $region26: #{tpu_custom_call.1} parent=1 // pred_check
      _
    $region27: #{tpu_custom_call.1} parent=1 // pred_check_branch
      %58 = sbr.rel (0) target = $region29
    $region28: #{tpu_custom_call.1} parent=1 // pred_region
      _
    $region29: #{tpu_custom_call.1} parent=1 // pred_fallthru
      _
    // Predicated region
    $region30: #{tpu_custom_call.1} parent=1 // pred_check
      _
    $region31: #{tpu_custom_call.1} parent=1 // pred_check_branch
      %60 = sbr.rel (0) target = $region33
    $region32: #{tpu_custom_call.1} parent=1 // pred_region
      %62 = vsyncadd [#allocation6], 0
      %s63 = sshll.u32 %s7, 4
      %s64 = int_to_ptr.hbm [resolvable:$true] %s63
      %s65 = sshll.u32 [#allocation7], 4
      %s66 = int_to_ptr.vmem [resolvable:$true] %s65
      %71 = dma.hbm_to_vmem [thread:$0]  %s64, 32, %s66, [#allocation6], 16, 16, 1
    $region33: #{tpu_custom_call.1} parent=1 // pred_fallthru
      _
    // Predicated region
    $region34: #{tpu_custom_call.1} parent=1 // pred_check
      _
    $region35: #{tpu_custom_call.1} parent=1 // pred_check_branch
      %73 = sbr.rel (0) target = $region37
    $region36: #{tpu_custom_call.1} parent=1 // pred_region
      %75 = vsyncadd [#allocation9], 0
      %s76 = sshll.u32 %s8, 4
      %s77 = int_to_ptr.hbm [resolvable:$true] %s76
      %s78 = sshll.u32 [#allocation8], 4
      %s79 = int_to_ptr.vmem [resolvable:$true] %s78
      %84 = dma.hbm_to_vmem [thread:$0]  %s77, 1024, %s79, [#allocation9], 128, 128, 8
    $region37: #{tpu_custom_call.1} parent=1 // pred_fallthru
      _
    // Predicated region
    $region38: #{tpu_custom_call.1} parent=1 // pred_check
      _
    $region39: #{tpu_custom_call.1} parent=1 // pred_check_branch
      %86 = sbr.rel (0) target = $region41
    $region40: #{tpu_custom_call.1} parent=1 // pred_region
      _
    $region41: #{tpu_custom_call.1} parent=1 // pred_fallthru
      _
    // Predicated region
    $region42: #{tpu_custom_call.1} parent=1 // pred_check
      _
    $region43: #{tpu_custom_call.1} parent=1 // pred_check_branch
      %88 = sbr.rel (0) target = $region45
    $region44: #{tpu_custom_call.1} parent=1 // pred_region
      _
    $region45: #{tpu_custom_call.1} parent=1 // pred_fallthru
      _
    // Predicated region
    $region46: #{tpu_custom_call.1} parent=1 // pred_check
      _
    $region47: #{tpu_custom_call.1} parent=1 // pred_check_branch
      %90 = sbr.rel (0) target = $region49
    $region48: #{tpu_custom_call.1} parent=1 // pred_region
      _
    $region49: #{tpu_custom_call.1} parent=1 // pred_fallthru
      _
    // Predicated region
    $region50: #{tpu_custom_call.1} parent=1 // pred_check
      _
    $region51: #{tpu_custom_call.1} parent=1 // pred_check_branch
      %92 = sbr.rel (0) target = $region53
    $region52: #{tpu_custom_call.1} parent=1 // pred_region
      _
    $region53: #{tpu_custom_call.1} parent=1 // pred_fallthru
      _
    // Predicated region
    $region54: #{tpu_custom_call.1} parent=1 // pred_check
      _
    $region55: #{tpu_custom_call.1} parent=1 // pred_check_branch
      %94 = sbr.rel (0) target = $region57
    $region56: #{tpu_custom_call.1} parent=1 // pred_region
      %96 = vsyncadd [#allocation9], 0
      %s97 = sshll.u32 %s13, 4
      %s98 = int_to_ptr.hbm [resolvable:$true] %s97
      %s99 = sshll.u32 [#allocation10], 4
      %s100 = int_to_ptr.vmem [resolvable:$true] %s99
      %105 = dma.hbm_to_vmem [thread:$0]  %s98, 32, %s100, [#allocation9], 16, 16, 1
    $region57: #{tpu_custom_call.1} parent=1 // pred_fallthru
      _
    // Predicated region
    $region58: #{tpu_custom_call.1} parent=1 // pred_check
      _
    $region59: #{tpu_custom_call.1} parent=1 // pred_check_branch
      %107 = sbr.rel (0) target = $region61
    $region60: #{tpu_custom_call.1} parent=1 // pred_region
      %109 = dma.done [#allocation3], 256
    $region61: #{tpu_custom_call.1} parent=1 // pred_fallthru
      _
    // Predicated region
    $region62: #{tpu_custom_call.1} parent=1 // pred_check
      _
    $region63: #{tpu_custom_call.1} parent=1 // pred_check_branch
      %111 = sbr.rel (0) target = $region65
    $region64: #{tpu_custom_call.1} parent=1 // pred_region
      %113 = dma.done [#allocation6], 32
    $region65: #{tpu_custom_call.1} parent=1 // pred_fallthru
      _
    // Predicated region
    $region66: #{tpu_custom_call.1} parent=1 // pred_check
      _
    $region67: #{tpu_custom_call.1} parent=1 // pred_check_branch
      %115 = sbr.rel (0) target = $region69
    $region68: #{tpu_custom_call.1} parent=1 // pred_region
      %117 = dma.done [#allocation6], 32
    $region69: #{tpu_custom_call.1} parent=1 // pred_fallthru
      _
    // Predicated region
    $region70: #{tpu_custom_call.1} parent=1 // pred_check
      _
    $region71: #{tpu_custom_call.1} parent=1 // pred_check_branch
      %119 = sbr.rel (0) target = $region73
    $region72: #{tpu_custom_call.1} parent=1 // pred_region
      %121 = dma.done [#allocation9], 1024
    $region73: #{tpu_custom_call.1} parent=1 // pred_fallthru
      _
    // Predicated region
    $region74: #{tpu_custom_call.1} parent=1 // pred_check
      _
    $region75: #{tpu_custom_call.1} parent=1 // pred_check_branch
      %123 = sbr.rel (0) target = $region77
    $region76: #{tpu_custom_call.1} parent=1 // pred_region
      %125 = dma.done [#allocation9], 32
    $region77: #{tpu_custom_call.1} parent=1 // pred_fallthru
      _
    %v126 = vld [vmem:[#allocation2] sm:$0xff]
    %v127 = vld [vmem:[#allocation2 + $0x8] sm:$0xff]
    %v128 = vld [vmem:[%s1] sm:$0xff]
    %v129 = vld [vmem:[%s1 + $0x8] sm:$0xff]
    %v130 = vld [vmem:[%s1 + $0x10] sm:$0xff]
    %v131 = vld [vmem:[%s1 + $0x18] sm:$0xff]
    %v132 = vld [vmem:[%s1 + $0x20] sm:$0xff]
    %v133 = vld [vmem:[%s1 + $0x28] sm:$0xff]
    %v134 = vld [vmem:[%s1 + $0x30] sm:$0xff]
    %v135 = vld [vmem:[%s1 + $0x38] sm:$0xff]
    %v136 = vld [vmem:[%s2] sm:$0xff]
    %v137 = vld [vmem:[%s2 + $0x8] sm:$0xff]
    %v138 = vld [vmem:[%s2 + $0x10] sm:$0xff]
    %v139 = vld [vmem:[%s2 + $0x18] sm:$0xff]
    %v140 = vld [vmem:[%s3] sm:$0x1]
    %v142 = vperm.slane %v140, 0
    %vm144 = vcmask 261120
    %v146 = vsel %vm144, %v126, 0
    %v149 = vsel %vm144, %v127, 0
    %151 = vmatpush.msra.mxu0 0.0
    %152 = vmatpush.msra.mxu0 0.0
    %153 = vmatpush.msra.mxu0 0.0
    %154 = vmatpush.msra.mxu0 0.0
    %155 = vmatpush.msra.mxu0 0.0
    %156 = vmatpush.msra.mxu0 0.0
    %157 = vmatpush.msra.mxu0 0.0
    %158 = vmatpush.msra.mxu0 0.0
    %159 = vmatpush.msra.mxu0 0.0
    %160 = vmatpush.msra.mxu0 0.0
    %161 = vmatpush.msra.mxu0 0.0
    %162 = vmatpush.msra.mxu0 0.0
    %163 = vmatpush.msra.mxu0 %v139
    %164 = vmatpush.msra.mxu0 %v138
    %165 = vmatpush.msra.mxu0 %v137
    %166 = vmatpush.msra.mxu0 %v136
    %167 = vmatmul.f32.gmra.mxu0 %v146
    %v168 = vpop.f32.mrf.mxu0
    %v169 = vadd.f32 %v142, %v168
    %170 = vmatmul.f32.gmra.mxu0 %v149
    %v171 = vpop.f32.mrf.mxu0
    %v172 = vadd.f32 %v142, %v171
    %173 = vdwg.mxu0
    %175 = vrot.lane.b32.xlu0 %v169, 120
    %v176 = vpop.permute.xlu0 %175
    %177 = vrot.lane.b32.xlu0 %v169, 112
    %v178 = vpop.permute.xlu0 %177
    %179 = vrot.lane.b32.xlu0 %v169, 104
    %v180 = vpop.permute.xlu0 %179
    %182 = vrot.lane.b32.xlu0 %v172, 120
    %v183 = vpop.permute.xlu0 %182
    %184 = vrot.lane.b32.xlu0 %v172, 112
    %v185 = vpop.permute.xlu0 %184
    %186 = vrot.lane.b32.xlu0 %v172, 104
    %v187 = vpop.permute.xlu0 %186
    %188 = vrot.lane.b32.xlu0 %v169, 96
    %v189 = vpop.permute.xlu0 %188
    %190 = vrot.lane.b32.xlu0 %v176, 96
    %v191 = vpop.permute.xlu0 %190
    %192 = vrot.lane.b32.xlu0 %v178, 96
    %v193 = vpop.permute.xlu0 %192
    %194 = vrot.lane.b32.xlu0 %v180, 96
    %v195 = vpop.permute.xlu0 %194
    %196 = vrot.lane.b32.xlu0 %v172, 96
    %v197 = vpop.permute.xlu0 %196
    %198 = vrot.lane.b32.xlu0 %v183, 96
    %v199 = vpop.permute.xlu0 %198
    %200 = vrot.lane.b32.xlu0 %v185, 96
    %v201 = vpop.permute.xlu0 %200
    %202 = vrot.lane.b32.xlu0 %v187, 96
    %v203 = vpop.permute.xlu0 %202
    %vm204 = vcmask 64512
    %v205 = vsel %vm204, %v169, 0
    %v207 = vsel %vm204, %v176, 0
    %v209 = vsel %vm204, %v178, 0
    %v211 = vsel %vm204, %v180, 0
    %v213 = vsel %vm204, %v172, 0
    %v215 = vsel %vm204, %v183, 0
    %v217 = vsel %vm204, %v185, 0
    %v219 = vsel %vm204, %v187, 0
    %v221 = vsel %vm204, %v189, 0
    %v223 = vsel %vm204, %v191, 0
    %v225 = vsel %vm204, %v193, 0
    %v227 = vsel %vm204, %v195, 0
    %v229 = vsel %vm204, %v197, 0
    %v231 = vsel %vm204, %v199, 0
    %v233 = vsel %vm204, %v201, 0
    %v235 = vsel %vm204, %v203, 0
    %237 = vmatpush.xpose.msra.mxu0 0.0
    %238 = vmatpush.xpose.msra.mxu0 0.0
    %239 = vmatpush.xpose.msra.mxu0 0.0
    %240 = vmatpush.xpose.msra.mxu0 0.0
    %241 = vmatpush.xpose.msra.mxu0 0.0
    %242 = vmatpush.xpose.msra.mxu0 0.0
    %243 = vmatpush.xpose.msra.mxu0 0.0
    %244 = vmatpush.xpose.msra.mxu0 0.0
    %245 = vmatpush.xpose.msra.mxu0 %v235
    %246 = vmatpush.xpose.msra.mxu0 %v233
    %247 = vmatpush.xpose.msra.mxu0 %v231
    %248 = vmatpush.xpose.msra.mxu0 %v229
    %249 = vmatpush.xpose.msra.mxu0 %v227
    %250 = vmatpush.xpose.msra.mxu0 %v225
    %251 = vmatpush.xpose.msra.mxu0 %v223
    %252 = vmatpush.xpose.msra.mxu0 %v221
    %253 = vmatmul.f32.gmra.mxu0 %v205
    %v254 = vpop.f32.mrf.mxu0
    %v255 = vadd.f32 %v128, %v254
    %256 = vmatmul.f32.gmra.mxu0 %v207
    %v257 = vpop.f32.mrf.mxu0
    %v258 = vadd.f32 %v129, %v257
    %259 = vmatmul.f32.gmra.mxu0 %v209
    %v260 = vpop.f32.mrf.mxu0
    %v261 = vadd.f32 %v130, %v260
    %262 = vmatmul.f32.gmra.mxu0 %v211
    %v263 = vpop.f32.mrf.mxu0
    %v264 = vadd.f32 %v131, %v263
    %265 = vmatmul.f32.gmra.mxu0 %v213
    %v266 = vpop.f32.mrf.mxu0
    %v267 = vadd.f32 %v132, %v266
    %268 = vmatmul.f32.gmra.mxu0 %v215
    %v269 = vpop.f32.mrf.mxu0
    %v270 = vadd.f32 %v133, %v269
    %271 = vmatmul.f32.gmra.mxu0 %v217
    %v272 = vpop.f32.mrf.mxu0
    %v273 = vadd.f32 %v134, %v272
    %274 = vmatmul.f32.gmra.mxu0 %v219
    %v275 = vpop.f32.mrf.mxu0
    %v276 = vadd.f32 %v135, %v275
    %277 = vdwg.mxu0
    %vm278 = vcmask 523264
    %v279 = vsel %vm278, %v255, -inf
    %280 = vmax.xlane.f32.xlu0 %v279
    %v281 = vpop.xlane.xlu0 %280
    %v282 = vsel %vm278, %v258, -inf
    %283 = vmax.xlane.f32.xlu0 %v282
    %v284 = vpop.xlane.xlu0 %283
    %v285 = vsel %vm278, %v261, -inf
    %286 = vmax.xlane.f32.xlu0 %v285
    %v287 = vpop.xlane.xlu0 %286
    %v288 = vsel %vm278, %v264, -inf
    %289 = vmax.xlane.f32.xlu0 %v288
    %v290 = vpop.xlane.xlu0 %289
    %v291 = vsel %vm278, %v267, -inf
    %292 = vmax.xlane.f32.xlu0 %v291
    %v293 = vpop.xlane.xlu0 %292
    %v294 = vsel %vm278, %v270, -inf
    %295 = vmax.xlane.f32.xlu0 %v294
    %v296 = vpop.xlane.xlu0 %295
    %v297 = vsel %vm278, %v273, -inf
    %298 = vmax.xlane.f32.xlu0 %v297
    %v299 = vpop.xlane.xlu0 %298
    %v300 = vsel %vm278, %v276, -inf
    %301 = vmax.xlane.f32.xlu0 %v300
    %v302 = vpop.xlane.xlu0 %301
    %v303 = vsub.f32 %v255, %v281
    %v304 = vsub.f32 %v258, %v284
    %v305 = vsub.f32 %v261, %v287
    %v306 = vsub.f32 %v264, %v290
    %v307 = vsub.f32 %v267, %v293
    %v308 = vsub.f32 %v270, %v296
    %v309 = vsub.f32 %v273, %v299
    %v310 = vsub.f32 %v276, %v302
    %v311 = vmul.f32 %v303, 1.442695
    %v312 = vpow.pop %v311
    %v313 = vmul.f32 %v304, 1.442695
    %v314 = vpow.pop %v313
    %v315 = vmul.f32 %v305, 1.442695
    %v316 = vpow.pop %v315
    %v317 = vmul.f32 %v306, 1.442695
    %v318 = vpow.pop %v317
    %v319 = vmul.f32 %v307, 1.442695
    %v320 = vpow.pop %v319
    %v321 = vmul.f32 %v308, 1.442695
    %v322 = vpow.pop %v321
    %v323 = vmul.f32 %v309, 1.442695
    %v324 = vpow.pop %v323
    %v325 = vmul.f32 %v310, 1.442695
    %v326 = vpow.pop %v325
    %v327 = vsel %vm278, %v312, 0.0
    %328 = vadd.xlane.f32.xlu0 %v327
    %v329 = vpop.xlane.xlu0 %328
    %v330 = vsel %vm278, %v314, 0.0
    %331 = vadd.xlane.f32.xlu0 %v330
    %v332 = vpop.xlane.xlu0 %331
    %v333 = vsel %vm278, %v316, 0.0
    %334 = vadd.xlane.f32.xlu0 %v333
    %v335 = vpop.xlane.xlu0 %334
    %v336 = vsel %vm278, %v318, 0.0
    %337 = vadd.xlane.f32.xlu0 %v336
    %v338 = vpop.xlane.xlu0 %337
    %v339 = vsel %vm278, %v320, 0.0
    %340 = vadd.xlane.f32.xlu0 %v339
    %v341 = vpop.xlane.xlu0 %340
    %v342 = vsel %vm278, %v322, 0.0
    %343 = vadd.xlane.f32.xlu0 %v342
    %v344 = vpop.xlane.xlu0 %343
    %v345 = vsel %vm278, %v324, 0.0
    %346 = vadd.xlane.f32.xlu0 %v345
    %v347 = vpop.xlane.xlu0 %346
    %v348 = vsel %vm278, %v326, 0.0
    %349 = vadd.xlane.f32.xlu0 %v348
    %v350 = vpop.xlane.xlu0 %349
    %v351 = vrcp.pop %v329
    %v352 = vrcp.pop %v332
    %v353 = vrcp.pop %v335
    %v354 = vrcp.pop %v338
    %v355 = vrcp.pop %v341
    %v356 = vrcp.pop %v344
    %v357 = vrcp.pop %v347
    %v358 = vrcp.pop %v350
    %v359 = vmul.f32 %v312, %v351
    %v360 = vmul.f32 %v314, %v352
    %v361 = vmul.f32 %v316, %v353
    %v362 = vmul.f32 %v318, %v354
    %v363 = vmul.f32 %v320, %v355
    %v364 = vmul.f32 %v322, %v356
    %v365 = vmul.f32 %v324, %v357
    %v366 = vmul.f32 %v326, %v358
    %367 = vrot.lane.b32.xlu0 %v169, 64
    %v368 = vpop.permute.xlu0 %367
    %369 = vrot.lane.b32.xlu0 %v176, 64
    %v370 = vpop.permute.xlu0 %369
    %371 = vrot.lane.b32.xlu0 %v178, 64
    %v372 = vpop.permute.xlu0 %371
    %373 = vrot.lane.b32.xlu0 %v180, 64
    %v374 = vpop.permute.xlu0 %373
    %375 = vrot.lane.b32.xlu0 %v172, 64
    %v376 = vpop.permute.xlu0 %375
    %377 = vrot.lane.b32.xlu0 %v183, 64
    %v378 = vpop.permute.xlu0 %377
    %379 = vrot.lane.b32.xlu0 %v185, 64
    %v380 = vpop.permute.xlu0 %379
    %381 = vrot.lane.b32.xlu0 %v187, 64
    %v382 = vpop.permute.xlu0 %381
    %v392 = vsel %vm278, %v359, 0
    %v395 = vsel %vm278, %v360, 0
    %v398 = vsel %vm278, %v361, 0
    %v401 = vsel %vm278, %v362, 0
    %v404 = vsel %vm278, %v363, 0
    %v407 = vsel %vm278, %v364, 0
    %v410 = vsel %vm278, %v365, 0
    %v413 = vsel %vm278, %v366, 0
    %415 = vmatpush.msra.mxu0 0.0
    %416 = vmatpush.msra.mxu0 0.0
    %417 = vmatpush.msra.mxu0 0.0
    %418 = vmatpush.msra.mxu0 0.0
    %419 = vmatpush.msra.mxu0 0.0
    %420 = vmatpush.msra.mxu0 0.0
    %421 = vmatpush.msra.mxu0 0.0
    %422 = vmatpush.msra.mxu0 0.0
    %423 = vmatpush.msra.mxu0 %v382
    %424 = vmatpush.msra.mxu0 %v380
    %425 = vmatpush.msra.mxu0 %v378
    %426 = vmatpush.msra.mxu0 %v376
    %427 = vmatpush.msra.mxu0 %v374
    %428 = vmatpush.msra.mxu0 %v372
    %429 = vmatpush.msra.mxu0 %v370
    %430 = vmatpush.msra.mxu0 %v368
    %431 = vmatmul.f32.gmra.mxu0 %v392
    %v432 = vpop.f32.mrf.mxu0
    %v433 = vadd.f32 0.0, %v432
    %434 = vmatmul.f32.gmra.mxu0 %v395
    %v435 = vpop.f32.mrf.mxu0
    %v436 = vadd.f32 0.0, %v435
    %437 = vmatmul.f32.gmra.mxu0 %v398
    %v438 = vpop.f32.mrf.mxu0
    %v439 = vadd.f32 0.0, %v438
    %440 = vmatmul.f32.gmra.mxu0 %v401
    %v441 = vpop.f32.mrf.mxu0
    %v442 = vadd.f32 0.0, %v441
    %443 = vmatmul.f32.gmra.mxu0 %v404
    %v444 = vpop.f32.mrf.mxu0
    %v445 = vadd.f32 0.0, %v444
    %446 = vmatmul.f32.gmra.mxu0 %v407
    %v447 = vpop.f32.mrf.mxu0
    %v448 = vadd.f32 0.0, %v447
    %449 = vmatmul.f32.gmra.mxu0 %v410
    %v450 = vpop.f32.mrf.mxu0
    %v451 = vadd.f32 0.0, %v450
    %452 = vmatmul.f32.gmra.mxu0 %v413
    %v453 = vpop.f32.mrf.mxu0
    %v454 = vadd.f32 0.0, %v453
    %455 = vdwg.mxu0
    %457 = vrot.lane.b32.xlu0 %v436, 8
    %v458 = vpop.permute.xlu0 %457
    %461 = vrot.lane.b32.xlu0 %v439, 16
    %v462 = vpop.permute.xlu0 %461
    %465 = vrot.lane.b32.xlu0 %v442, 24
    %v466 = vpop.permute.xlu0 %465
    %v468 = vsel %vm204, %v433, %v458
    %vm469 = vcmask 130048
    %v470 = vsel %vm469, %v468, %v462
    %vm471 = vcmask 195584
    %v472 = vsel %vm471, %v470, %v466
    %474 = vrot.lane.b32.xlu0 %v448, 8
    %v475 = vpop.permute.xlu0 %474
    %478 = vrot.lane.b32.xlu0 %v451, 16
    %v479 = vpop.permute.xlu0 %478
    %482 = vrot.lane.b32.xlu0 %v454, 24
    %v483 = vpop.permute.xlu0 %482
    %v485 = vsel %vm204, %v445, %v475
    %v486 = vsel %vm469, %v485, %v479
    %v487 = vsel %vm471, %v486, %v483
    %v488 = vld [vmem:[%s4] sm:$0xff]
    %v489 = vld [vmem:[%s4 + $0x8] sm:$0xff]
    %v490 = vld [vmem:[%s4 + $0x10] sm:$0xff]
    %v491 = vld [vmem:[%s4 + $0x18] sm:$0xff]
    %v492 = vld [vmem:[#allocation5] sm:$0x1]
    %v494 = vperm.slane %v492, 0
    %v497 = vsel %vm144, %v472, 0
    %v500 = vsel %vm144, %v487, 0
    %502 = vmatpush.msra.mxu0 0.0
    %503 = vmatpush.msra.mxu0 0.0
    %504 = vmatpush.msra.mxu0 0.0
    %505 = vmatpush.msra.mxu0 0.0
    %506 = vmatpush.msra.mxu0 0.0
    %507 = vmatpush.msra.mxu0 0.0
    %508 = vmatpush.msra.mxu0 0.0
    %509 = vmatpush.msra.mxu0 0.0
    %510 = vmatpush.msra.mxu0 0.0
    %511 = vmatpush.msra.mxu0 0.0
    %512 = vmatpush.msra.mxu0 0.0
    %513 = vmatpush.msra.mxu0 0.0
    %514 = vmatpush.msra.mxu0 %v491
    %515 = vmatpush.msra.mxu0 %v490
    %516 = vmatpush.msra.mxu0 %v489
    %517 = vmatpush.msra.mxu0 %v488
    %518 = vmatmul.f32.gmra.mxu0 %v497
    %v519 = vpop.f32.mrf.mxu0
    %v520 = vadd.f32 %v494, %v519
    %521 = vmatmul.f32.gmra.mxu0 %v500
    %v522 = vpop.f32.mrf.mxu0
    %v523 = vadd.f32 %v494, %v522
    %524 = vdwg.mxu0
    %v525 = vadd.f32 %v520, %v126
    %v526 = vadd.f32 %v523, %v127
    %v527 = vld [vmem:[%s6] sm:$0x1]
    %v528 = vld [vmem:[#allocation7] sm:$0x1]
    %v529 = vsel %vm144, %v525, 0.0
    %530 = vadd.xlane.f32.xlu0 %v529
    %v531 = vpop.xlane.xlu0 %530
    %v532 = vsel %vm144, %v526, 0.0
    %533 = vadd.xlane.f32.xlu0 %v532
    %v534 = vpop.xlane.xlu0 %533
    %v535 = vrcp.pop 32.0
    %v536 = vmul.f32 32.0, %v535
    %v537 = vsub.f32 1.0, %v536
    %v538 = vmul.f32 %v535, %v537
    %v539 = vadd.f32 %v535, %v538
    %vm540 = vweird.f32 %v535
    %v541 = vsel %vm540, %v535, %v539
    %v542 = vmul.f32 %v531, %v541
    %v543 = vmul.f32 %v534, %v541
    %v544 = vsub.f32 %v525, %v542
    %v545 = vsub.f32 %v526, %v543
    %v546 = vmul.f32 %v544, %v544
    %v547 = vmul.f32 %v545, %v545
    %v548 = vsel %vm144, %v546, 0.0
    %549 = vadd.xlane.f32.xlu0 %v548
    %v550 = vpop.xlane.xlu0 %549
    %v551 = vsel %vm144, %v547, 0.0
    %552 = vadd.xlane.f32.xlu0 %v551
    %v553 = vpop.xlane.xlu0 %552
    %v554 = vmul.f32 %v550, %v541
    %v555 = vmul.f32 %v553, %v541
    %v556 = vadd.f32 %v554, 1e-12
    %v557 = vadd.f32 %v555, 1e-12
    %v558 = vrsqrt.pop %v556
    %v559 = vmul.f32 %v558, %v556
    %v560 = vmul.f32 %v559, %v558
    %v561 = vmul.f32 0.5, %v560
    %v562 = vsub.f32 1.5, %v561
    %v563 = vmul.f32 %v558, %v562
    %vm564 = vweird.f32 %v556
    %vm565 = vweird.f32 %v558
    %vm566 = vmor %vm564, %vm565
    %v567 = vsel %vm566, %v558, %v563
    %v568 = vrsqrt.pop %v557
    %v569 = vmul.f32 %v568, %v557
    %v570 = vmul.f32 %v569, %v568
    %v571 = vmul.f32 0.5, %v570
    %v572 = vsub.f32 1.5, %v571
    %v573 = vmul.f32 %v568, %v572
    %vm574 = vweird.f32 %v557
    %vm575 = vweird.f32 %v568
    %vm576 = vmor %vm574, %vm575
    %v577 = vsel %vm576, %v568, %v573
    %v578 = vmul.f32 %v544, %v567
    %v579 = vmul.f32 %v545, %v577
    %v581 = vperm.slane %v527, 0
    %v583 = vmul.f32 %v578, %v581
    %v584 = vmul.f32 %v579, %v581
    %v586 = vperm.slane %v528, 0
    %v588 = vadd.f32 %v583, %v586
    %v589 = vadd.f32 %v584, %v586
    %v590 = vld [vmem:[#allocation8] sm:$0xff]
    %v591 = vld [vmem:[#allocation8 + $0x8] sm:$0xff]
    %v592 = vld [vmem:[#allocation8 + $0x10] sm:$0xff]
    %v593 = vld [vmem:[#allocation8 + $0x18] sm:$0xff]
    %v594 = vld [vmem:[%s9] sm:$0x1]
    %v596 = vperm.slane %v594, 0
    %v599 = vsel %vm144, %v588, 0
    %v602 = vsel %vm144, %v589, 0
    %604 = vmatpush.msra.mxu0 0.0
    %605 = vmatpush.msra.mxu0 0.0
    %606 = vmatpush.msra.mxu0 0.0
    %607 = vmatpush.msra.mxu0 0.0
    %608 = vmatpush.msra.mxu0 0.0
    %609 = vmatpush.msra.mxu0 0.0
    %610 = vmatpush.msra.mxu0 0.0
    %611 = vmatpush.msra.mxu0 0.0
    %612 = vmatpush.msra.mxu0 0.0
    %613 = vmatpush.msra.mxu0 0.0
    %614 = vmatpush.msra.mxu0 0.0
    %615 = vmatpush.msra.mxu0 0.0
    %616 = vmatpush.msra.mxu0 %v593
    %617 = vmatpush.msra.mxu0 %v592
    %618 = vmatpush.msra.mxu0 %v591
    %619 = vmatpush.msra.mxu0 %v590
    %620 = vmatmul.f32.gmra.mxu0 %v599
    %v621 = vpop.f32.mrf.mxu0
    %v622 = vadd.f32 %v596, %v621
    %623 = vmatmul.f32.gmra.mxu0 %v602
    %v624 = vpop.f32.mrf.mxu0
    %v625 = vadd.f32 %v596, %v624
    %626 = vdwg.mxu0
    %v627 = vmul.f32 %v622, 0.5
    %v628 = vmul.f32 %v625, 0.5
    %v629 = vmul.f32 %v622, 0.70710677
    %v630 = vmul.f32 %v625, 0.70710677
    %v631 = vmul.f32 %v629, %v629
    %v632 = vmin.f32 16.0, %v631
    %v633 = vmul.f32 %v632, 2.1237322e-06
    %v634 = vadd.f32 %v633, 0.00028619796
    %v635 = vmul.f32 %v632, %v634
    %v636 = vadd.f32 %v635, 0.0036580483
    %v637 = vmul.f32 %v632, %v636
    %v638 = vadd.f32 %v637, 0.05243302
    %v639 = vmul.f32 %v632, %v638
    %v640 = vadd.f32 %v639, 0.18741608
    %v641 = vmul.f32 %v632, %v640
    %v642 = vadd.f32 %v641, 1.1283791
    %v643 = vmul.f32 %v629, %v642
    %v644 = vmul.f32 %v632, 3.8918573e-05
    %v645 = vadd.f32 %v644, 0.001143296
    %v646 = vmul.f32 %v632, %v645
    %v647 = vadd.f32 %v646, 0.014752088
    %v648 = vmul.f32 %v632, %v647
    %v649 = vadd.f32 %v648, 0.112945676
    %v650 = vmul.f32 %v632, %v649
    %v651 = vadd.f32 %v650, 0.4994258
    %v652 = vmul.f32 %v632, %v651
    %v653 = vadd.f32 %v652, 1.0
    %v654 = vrcp.pop %v653
    %v655 = vmul.f32 %v653, %v654
    %v656 = vsub.f32 1.0, %v655
    %v657 = vmul.f32 %v654, %v656
    %v658 = vadd.f32 %v654, %v657
    %vm659 = vweird.f32 %v653
    %vm660 = vweird.f32 %v654
    %vm661 = vmor %vm659, %vm660
    %v662 = vsel %vm661, %v654, %v658
    %v663 = vand.u32 2147483647, %v653
    %vm664 = vcmp.eq.f32.partialorder %v663, 8.507059e+37
    %v665 = vand.u32 %v653, 2147483648
    %v666 = vor.u32 1.1754944e-38, %v665
    %v667 = vsel %vm664, %v666, %v662
    %v668 = vmul.f32 %v643, %v667
    %v669 = vmin.f32 %v668, 1.0
    %v670 = vmax.f32 %v669, -1.0
    %v671 = vmul.f32 %v630, %v630
    %v672 = vmin.f32 16.0, %v671
    %v673 = vmul.f32 %v672, 2.1237322e-06
    %v674 = vadd.f32 %v673, 0.00028619796
    %v675 = vmul.f32 %v672, %v674
    %v676 = vadd.f32 %v675, 0.0036580483
    %v677 = vmul.f32 %v672, %v676
    %v678 = vadd.f32 %v677, 0.05243302
    %v679 = vmul.f32 %v672, %v678
    %v680 = vadd.f32 %v679, 0.18741608
    %v681 = vmul.f32 %v672, %v680
    %v682 = vadd.f32 %v681, 1.1283791
    %v683 = vmul.f32 %v630, %v682
    %v684 = vmul.f32 %v672, 3.8918573e-05
    %v685 = vadd.f32 %v684, 0.001143296
    %v686 = vmul.f32 %v672, %v685
    %v687 = vadd.f32 %v686, 0.014752088
    %v688 = vmul.f32 %v672, %v687
    %v689 = vadd.f32 %v688, 0.112945676
    %v690 = vmul.f32 %v672, %v689
    %v691 = vadd.f32 %v690, 0.4994258
    %v692 = vmul.f32 %v672, %v691
    %v693 = vadd.f32 %v692, 1.0
    %v694 = vrcp.pop %v693
    %v695 = vmul.f32 %v693, %v694
    %v696 = vsub.f32 1.0, %v695
    %v697 = vmul.f32 %v694, %v696
    %v698 = vadd.f32 %v694, %v697
    %vm699 = vweird.f32 %v693
    %vm700 = vweird.f32 %v694
    %vm701 = vmor %vm699, %vm700
    %v702 = vsel %vm701, %v694, %v698
    %v703 = vand.u32 2147483647, %v693
    %vm704 = vcmp.eq.f32.partialorder %v703, 8.507059e+37
    %v705 = vand.u32 %v693, 2147483648
    %v706 = vor.u32 1.1754944e-38, %v705
    %v707 = vsel %vm704, %v706, %v702
    %v708 = vmul.f32 %v683, %v707
    %v709 = vmin.f32 %v708, 1.0
    %v710 = vmax.f32 %v709, -1.0
    %v711 = vadd.f32 %v670, 1.0
    %v712 = vadd.f32 %v710, 1.0
    %v713 = vmul.f32 %v627, %v711
    %v714 = vmul.f32 %v628, %v712
    %v715 = vld [vmem:[%s10] sm:$0xff]
    %v716 = vld [vmem:[%s10 + $0x8] sm:$0xff]
    %v717 = vld [vmem:[%s10 + $0x10] sm:$0xff]
    %v718 = vld [vmem:[%s10 + $0x18] sm:$0xff]
    %v719 = vld [vmem:[%s10 + $0x20] sm:$0xff]
    %v720 = vld [vmem:[%s10 + $0x28] sm:$0xff]
    %v721 = vld [vmem:[%s10 + $0x30] sm:$0xff]
    %v722 = vld [vmem:[%s10 + $0x38] sm:$0xff]
    %v723 = vld [vmem:[%s11] sm:$0x1]
    %v725 = vperm.slane %v723, 0
    %v728 = vsel %vm278, %v713, 0
    %v731 = vsel %vm278, %v714, 0
    %733 = vmatpush.msra.mxu0 0.0
    %734 = vmatpush.msra.mxu0 0.0
    %735 = vmatpush.msra.mxu0 0.0
    %736 = vmatpush.msra.mxu0 0.0
    %737 = vmatpush.msra.mxu0 0.0
    %738 = vmatpush.msra.mxu0 0.0
    %739 = vmatpush.msra.mxu0 0.0
    %740 = vmatpush.msra.mxu0 0.0
    %741 = vmatpush.msra.mxu0 %v722
    %742 = vmatpush.msra.mxu0 %v721
    %743 = vmatpush.msra.mxu0 %v720
    %744 = vmatpush.msra.mxu0 %v719
    %745 = vmatpush.msra.mxu0 %v718
    %746 = vmatpush.msra.mxu0 %v717
    %747 = vmatpush.msra.mxu0 %v716
    %748 = vmatpush.msra.mxu0 %v715
    %749 = vmatmul.f32.gmra.mxu0 %v728
    %v750 = vpop.f32.mrf.mxu0
    %v751 = vadd.f32 %v725, %v750
    %752 = vmatmul.f32.gmra.mxu0 %v731
    %v753 = vpop.f32.mrf.mxu0
    %v754 = vadd.f32 %v725, %v753
    %755 = vdwg.mxu0
    %v756 = vadd.f32 %v751, %v588
    %v757 = vadd.f32 %v754, %v589
    %v758 = vld [vmem:[%s12] sm:$0x1]
    %v759 = vld [vmem:[#allocation10] sm:$0x1]
    %v760 = vsel %vm144, %v756, 0.0
    %761 = vadd.xlane.f32.xlu0 %v760
    %v762 = vpop.xlane.xlu0 %761
    %v763 = vsel %vm144, %v757, 0.0
    %764 = vadd.xlane.f32.xlu0 %v763
    %v765 = vpop.xlane.xlu0 %764
    %v766 = vmul.f32 %v762, %v541
    %v767 = vmul.f32 %v765, %v541
    %v768 = vsub.f32 %v756, %v766
    %v769 = vsub.f32 %v757, %v767
    %v770 = vmul.f32 %v768, %v768
    %v771 = vmul.f32 %v769, %v769
    %v772 = vsel %vm144, %v770, 0.0
    %773 = vadd.xlane.f32.xlu0 %v772
    %v774 = vpop.xlane.xlu0 %773
    %v775 = vsel %vm144, %v771, 0.0
    %776 = vadd.xlane.f32.xlu0 %v775
    %v777 = vpop.xlane.xlu0 %776
    %v778 = vmul.f32 %v774, %v541
    %v779 = vmul.f32 %v777, %v541
    %v780 = vadd.f32 %v778, 1e-12
    %v781 = vadd.f32 %v779, 1e-12
    %v782 = vrsqrt.pop %v780
    %v783 = vmul.f32 %v782, %v780
    %v784 = vmul.f32 %v783, %v782
    %v785 = vmul.f32 0.5, %v784
    %v786 = vsub.f32 1.5, %v785
    %v787 = vmul.f32 %v782, %v786
    %vm788 = vweird.f32 %v780
    %vm789 = vweird.f32 %v782
    %vm790 = vmor %vm788, %vm789
    %v791 = vsel %vm790, %v782, %v787
    %v792 = vrsqrt.pop %v781
    %v793 = vmul.f32 %v792, %v781
    %v794 = vmul.f32 %v793, %v792
    %v795 = vmul.f32 0.5, %v794
    %v796 = vsub.f32 1.5, %v795
    %v797 = vmul.f32 %v792, %v796
    %vm798 = vweird.f32 %v781
    %vm799 = vweird.f32 %v792
    %vm800 = vmor %vm798, %vm799
    %v801 = vsel %vm800, %v792, %v797
    %v802 = vmul.f32 %v768, %v791
    %v803 = vmul.f32 %v769, %v801
    %v805 = vperm.slane %v758, 0
    %v807 = vmul.f32 %v802, %v805
    %v808 = vmul.f32 %v803, %v805
    %v810 = vperm.slane %v759, 0
    %v812 = vadd.f32 %v807, %v810
    %v813 = vadd.f32 %v808, %v810
    %s814 = scalar_lea.vmem %s2, 32
    %v815 = vld [vmem:[%s814] sm:$0xff]
    %v816 = vld [vmem:[%s814 + $0x8] sm:$0xff]
    %v817 = vld [vmem:[%s814 + $0x10] sm:$0xff]
    %v818 = vld [vmem:[%s814 + $0x18] sm:$0xff]
    %s819 = scalar_lea.vmem %s3, 1
    %v820 = vld [vmem:[%s819] sm:$0x1]
    %v822 = vperm.slane %v820, 0
    %v825 = vsel %vm144, %v812, 0
    %v828 = vsel %vm144, %v813, 0
    %830 = vmatpush.msra.mxu0 0.0
    %831 = vmatpush.msra.mxu0 0.0
    %832 = vmatpush.msra.mxu0 0.0
    %833 = vmatpush.msra.mxu0 0.0
    %834 = vmatpush.msra.mxu0 0.0
    %835 = vmatpush.msra.mxu0 0.0
    %836 = vmatpush.msra.mxu0 0.0
    %837 = vmatpush.msra.mxu0 0.0
    %838 = vmatpush.msra.mxu0 0.0
    %839 = vmatpush.msra.mxu0 0.0
    %840 = vmatpush.msra.mxu0 0.0
    %841 = vmatpush.msra.mxu0 0.0
    %842 = vmatpush.msra.mxu0 %v818
    %843 = vmatpush.msra.mxu0 %v817
    %844 = vmatpush.msra.mxu0 %v816
    %845 = vmatpush.msra.mxu0 %v815
    %846 = vmatmul.f32.gmra.mxu0 %v825
    %v847 = vpop.f32.mrf.mxu0
    %v848 = vadd.f32 %v822, %v847
    %849 = vmatmul.f32.gmra.mxu0 %v828
    %v850 = vpop.f32.mrf.mxu0
    %v851 = vadd.f32 %v822, %v850
    %852 = vdwg.mxu0
    %854 = vrot.lane.b32.xlu0 %v848, 120
    %v855 = vpop.permute.xlu0 %854
    %856 = vrot.lane.b32.xlu0 %v848, 112
    %v857 = vpop.permute.xlu0 %856
    %858 = vrot.lane.b32.xlu0 %v848, 104
    %v859 = vpop.permute.xlu0 %858
    %861 = vrot.lane.b32.xlu0 %v851, 120
    %v862 = vpop.permute.xlu0 %861
    %863 = vrot.lane.b32.xlu0 %v851, 112
    %v864 = vpop.permute.xlu0 %863
    %865 = vrot.lane.b32.xlu0 %v851, 104
    %v866 = vpop.permute.xlu0 %865
    %867 = vrot.lane.b32.xlu0 %v848, 96
    %v868 = vpop.permute.xlu0 %867
    %869 = vrot.lane.b32.xlu0 %v855, 96
    %v870 = vpop.permute.xlu0 %869
    %871 = vrot.lane.b32.xlu0 %v857, 96
    %v872 = vpop.permute.xlu0 %871
    %873 = vrot.lane.b32.xlu0 %v859, 96
    %v874 = vpop.permute.xlu0 %873
    %875 = vrot.lane.b32.xlu0 %v851, 96
    %v876 = vpop.permute.xlu0 %875
    %877 = vrot.lane.b32.xlu0 %v862, 96
    %v878 = vpop.permute.xlu0 %877
    %879 = vrot.lane.b32.xlu0 %v864, 96
    %v880 = vpop.permute.xlu0 %879
    %881 = vrot.lane.b32.xlu0 %v866, 96
    %v882 = vpop.permute.xlu0 %881
    %v883 = vsel %vm204, %v848, 0
    %v885 = vsel %vm204, %v855, 0
    %v887 = vsel %vm204, %v857, 0
    %v889 = vsel %vm204, %v859, 0
    %v891 = vsel %vm204, %v851, 0
    %v893 = vsel %vm204, %v862, 0
    %v895 = vsel %vm204, %v864, 0
    %v897 = vsel %vm204, %v866, 0
    %v899 = vsel %vm204, %v868, 0
    %v901 = vsel %vm204, %v870, 0
    %v903 = vsel %vm204, %v872, 0
    %v905 = vsel %vm204, %v874, 0
    %v907 = vsel %vm204, %v876, 0
    %v909 = vsel %vm204, %v878, 0
    %v911 = vsel %vm204, %v880, 0
    %v913 = vsel %vm204, %v882, 0
    %915 = vmatpush.xpose.msra.mxu0 0.0
    %916 = vmatpush.xpose.msra.mxu0 0.0
    %917 = vmatpush.xpose.msra.mxu0 0.0
    %918 = vmatpush.xpose.msra.mxu0 0.0
    %919 = vmatpush.xpose.msra.mxu0 0.0
    %920 = vmatpush.xpose.msra.mxu0 0.0
    %921 = vmatpush.xpose.msra.mxu0 0.0
    %922 = vmatpush.xpose.msra.mxu0 0.0
    %923 = vmatpush.xpose.msra.mxu0 %v913
    %924 = vmatpush.xpose.msra.mxu0 %v911
    %925 = vmatpush.xpose.msra.mxu0 %v909
    %926 = vmatpush.xpose.msra.mxu0 %v907
    %927 = vmatpush.xpose.msra.mxu0 %v905
    %928 = vmatpush.xpose.msra.mxu0 %v903
    %929 = vmatpush.xpose.msra.mxu0 %v901
    %930 = vmatpush.xpose.msra.mxu0 %v899
    %931 = vmatmul.f32.gmra.mxu0 %v883
    %v932 = vpop.f32.mrf.mxu0
    %v933 = vadd.f32 %v128, %v932
    %934 = vmatmul.f32.gmra.mxu0 %v885
    %v935 = vpop.f32.mrf.mxu0
    %v936 = vadd.f32 %v129, %v935
    %937 = vmatmul.f32.gmra.mxu0 %v887
    %v938 = vpop.f32.mrf.mxu0
    %v939 = vadd.f32 %v130, %v938
    %940 = vmatmul.f32.gmra.mxu0 %v889
    %v941 = vpop.f32.mrf.mxu0
    %v942 = vadd.f32 %v131, %v941
    %943 = vmatmul.f32.gmra.mxu0 %v891
    %v944 = vpop.f32.mrf.mxu0
    %v945 = vadd.f32 %v132, %v944
    %946 = vmatmul.f32.gmra.mxu0 %v893
    %v947 = vpop.f32.mrf.mxu0
    %v948 = vadd.f32 %v133, %v947
    %949 = vmatmul.f32.gmra.mxu0 %v895
    %v950 = vpop.f32.mrf.mxu0
    %v951 = vadd.f32 %v134, %v950
    %952 = vmatmul.f32.gmra.mxu0 %v897
    %v953 = vpop.f32.mrf.mxu0
    %v954 = vadd.f32 %v135, %v953
    %955 = vdwg.mxu0
    %v956 = vsel %vm278, %v933, -inf
    %957 = vmax.xlane.f32.xlu0 %v956
    %v958 = vpop.xlane.xlu0 %957
    %v959 = vsel %vm278, %v936, -inf
    %960 = vmax.xlane.f32.xlu0 %v959
    %v961 = vpop.xlane.xlu0 %960
    %v962 = vsel %vm278, %v939, -inf
    %963 = vmax.xlane.f32.xlu0 %v962
    %v964 = vpop.xlane.xlu0 %963
    %v965 = vsel %vm278, %v942, -inf
    %966 = vmax.xlane.f32.xlu0 %v965
    %v967 = vpop.xlane.xlu0 %966
    %v968 = vsel %vm278, %v945, -inf
    %969 = vmax.xlane.f32.xlu0 %v968
    %v970 = vpop.xlane.xlu0 %969
    %v971 = vsel %vm278, %v948, -inf
    %972 = vmax.xlane.f32.xlu0 %v971
    %v973 = vpop.xlane.xlu0 %972
    %v974 = vsel %vm278, %v951, -inf
    %975 = vmax.xlane.f32.xlu0 %v974
    %v976 = vpop.xlane.xlu0 %975
    %v977 = vsel %vm278, %v954, -inf
    %978 = vmax.xlane.f32.xlu0 %v977
    %v979 = vpop.xlane.xlu0 %978
    %v980 = vsub.f32 %v933, %v958
    %v981 = vsub.f32 %v936, %v961
    %v982 = vsub.f32 %v939, %v964
    %v983 = vsub.f32 %v942, %v967
    %v984 = vsub.f32 %v945, %v970
    %v985 = vsub.f32 %v948, %v973
    %v986 = vsub.f32 %v951, %v976
    %v987 = vsub.f32 %v954, %v979
    %v988 = vmul.f32 %v980, 1.442695
    %v989 = vpow.pop %v988
    %v990 = vmul.f32 %v981, 1.442695
    %v991 = vpow.pop %v990
    %v992 = vmul.f32 %v982, 1.442695
    %v993 = vpow.pop %v992
    %v994 = vmul.f32 %v983, 1.442695
    %v995 = vpow.pop %v994
    %v996 = vmul.f32 %v984, 1.442695
    %v997 = vpow.pop %v996
    %v998 = vmul.f32 %v985, 1.442695
    %v999 = vpow.pop %v998
    %v1000 = vmul.f32 %v986, 1.442695
    %v1001 = vpow.pop %v1000
    %v1002 = vmul.f32 %v987, 1.442695
    %v1003 = vpow.pop %v1002
    %v1004 = vsel %vm278, %v989, 0.0
    %1005 = vadd.xlane.f32.xlu0 %v1004
    %v1006 = vpop.xlane.xlu0 %1005
    %v1007 = vsel %vm278, %v991, 0.0
    %1008 = vadd.xlane.f32.xlu0 %v1007
    %v1009 = vpop.xlane.xlu0 %1008
    %v1010 = vsel %vm278, %v993, 0.0
    %1011 = vadd.xlane.f32.xlu0 %v1010
    %v1012 = vpop.xlane.xlu0 %1011
    %v1013 = vsel %vm278, %v995, 0.0
    %1014 = vadd.xlane.f32.xlu0 %v1013
    %v1015 = vpop.xlane.xlu0 %1014
    %v1016 = vsel %vm278, %v997, 0.0
    %1017 = vadd.xlane.f32.xlu0 %v1016
    %v1018 = vpop.xlane.xlu0 %1017
    %v1019 = vsel %vm278, %v999, 0.0
    %1020 = vadd.xlane.f32.xlu0 %v1019
    %v1021 = vpop.xlane.xlu0 %1020
    %v1022 = vsel %vm278, %v1001, 0.0
    %1023 = vadd.xlane.f32.xlu0 %v1022
    %v1024 = vpop.xlane.xlu0 %1023
    %v1025 = vsel %vm278, %v1003, 0.0
    %1026 = vadd.xlane.f32.xlu0 %v1025
    %v1027 = vpop.xlane.xlu0 %1026
    %v1028 = vrcp.pop %v1006
    %v1029 = vrcp.pop %v1009
    %v1030 = vrcp.pop %v1012
    %v1031 = vrcp.pop %v1015
    %v1032 = vrcp.pop %v1018
    %v1033 = vrcp.pop %v1021
    %v1034 = vrcp.pop %v1024
    %v1035 = vrcp.pop %v1027
    %v1036 = vmul.f32 %v989, %v1028
    %v1037 = vmul.f32 %v991, %v1029
    %v1038 = vmul.f32 %v993, %v1030
    %v1039 = vmul.f32 %v995, %v1031
    %v1040 = vmul.f32 %v997, %v1032
    %v1041 = vmul.f32 %v999, %v1033
    %v1042 = vmul.f32 %v1001, %v1034
    %v1043 = vmul.f32 %v1003, %v1035
    %1044 = vrot.lane.b32.xlu0 %v848, 64
    %v1045 = vpop.permute.xlu0 %1044
    %1046 = vrot.lane.b32.xlu0 %v855, 64
    %v1047 = vpop.permute.xlu0 %1046
    %1048 = vrot.lane.b32.xlu0 %v857, 64
    %v1049 = vpop.permute.xlu0 %1048
    %1050 = vrot.lane.b32.xlu0 %v859, 64
    %v1051 = vpop.permute.xlu0 %1050
    %1052 = vrot.lane.b32.xlu0 %v851, 64
    %v1053 = vpop.permute.xlu0 %1052
    %1054 = vrot.lane.b32.xlu0 %v862, 64
    %v1055 = vpop.permute.xlu0 %1054
    %1056 = vrot.lane.b32.xlu0 %v864, 64
    %v1057 = vpop.permute.xlu0 %1056
    %1058 = vrot.lane.b32.xlu0 %v866, 64
    %v1059 = vpop.permute.xlu0 %1058
    %v1069 = vsel %vm278, %v1036, 0
    %v1072 = vsel %vm278, %v1037, 0
    %v1075 = vsel %vm278, %v1038, 0
    %v1078 = vsel %vm278, %v1039, 0
    %v1081 = vsel %vm278, %v1040, 0
    %v1084 = vsel %vm278, %v1041, 0
    %v1087 = vsel %vm278, %v1042, 0
    %v1090 = vsel %vm278, %v1043, 0
    %1092 = vmatpush.msra.mxu0 0.0
    %1093 = vmatpush.msra.mxu0 0.0
    %1094 = vmatpush.msra.mxu0 0.0
    %1095 = vmatpush.msra.mxu0 0.0
    %1096 = vmatpush.msra.mxu0 0.0
    %1097 = vmatpush.msra.mxu0 0.0
    %1098 = vmatpush.msra.mxu0 0.0
    %1099 = vmatpush.msra.mxu0 0.0
    %1100 = vmatpush.msra.mxu0 %v1059
    %1101 = vmatpush.msra.mxu0 %v1057
    %1102 = vmatpush.msra.mxu0 %v1055
    %1103 = vmatpush.msra.mxu0 %v1053
    %1104 = vmatpush.msra.mxu0 %v1051
    %1105 = vmatpush.msra.mxu0 %v1049
    %1106 = vmatpush.msra.mxu0 %v1047
    %1107 = vmatpush.msra.mxu0 %v1045
    %1108 = vmatmul.f32.gmra.mxu0 %v1069
    %v1109 = vpop.f32.mrf.mxu0
    %v1110 = vadd.f32 0.0, %v1109
    %1111 = vmatmul.f32.gmra.mxu0 %v1072
    %v1112 = vpop.f32.mrf.mxu0
    %v1113 = vadd.f32 0.0, %v1112
    %1114 = vmatmul.f32.gmra.mxu0 %v1075
    %v1115 = vpop.f32.mrf.mxu0
    %v1116 = vadd.f32 0.0, %v1115
    %1117 = vmatmul.f32.gmra.mxu0 %v1078
    %v1118 = vpop.f32.mrf.mxu0
    %v1119 = vadd.f32 0.0, %v1118
    %1120 = vmatmul.f32.gmra.mxu0 %v1081
    %v1121 = vpop.f32.mrf.mxu0
    %v1122 = vadd.f32 0.0, %v1121
    %1123 = vmatmul.f32.gmra.mxu0 %v1084
    %v1124 = vpop.f32.mrf.mxu0
    %v1125 = vadd.f32 0.0, %v1124
    %1126 = vmatmul.f32.gmra.mxu0 %v1087
    %v1127 = vpop.f32.mrf.mxu0
    %v1128 = vadd.f32 0.0, %v1127
    %1129 = vmatmul.f32.gmra.mxu0 %v1090
    %v1130 = vpop.f32.mrf.mxu0
    %v1131 = vadd.f32 0.0, %v1130
    %1132 = vdwg.mxu0
    %1134 = vrot.lane.b32.xlu0 %v1113, 8
    %v1135 = vpop.permute.xlu0 %1134
    %1138 = vrot.lane.b32.xlu0 %v1116, 16
    %v1139 = vpop.permute.xlu0 %1138
    %1142 = vrot.lane.b32.xlu0 %v1119, 24
    %v1143 = vpop.permute.xlu0 %1142
    %v1145 = vsel %vm204, %v1110, %v1135
    %v1146 = vsel %vm469, %v1145, %v1139
    %v1147 = vsel %vm471, %v1146, %v1143
    %1149 = vrot.lane.b32.xlu0 %v1125, 8
    %v1150 = vpop.permute.xlu0 %1149
    %1153 = vrot.lane.b32.xlu0 %v1128, 16
    %v1154 = vpop.permute.xlu0 %1153
    %1157 = vrot.lane.b32.xlu0 %v1131, 24
    %v1158 = vpop.permute.xlu0 %1157
    %v1160 = vsel %vm204, %v1122, %v1150
    %v1161 = vsel %vm469, %v1160, %v1154
    %v1162 = vsel %vm471, %v1161, %v1158
    %s1163 = scalar_lea.vmem %s4, 32
    %v1164 = vld [vmem:[%s1163] sm:$0xff]
    %v1165 = vld [vmem:[%s1163 + $0x8] sm:$0xff]
    %v1166 = vld [vmem:[%s1163 + $0x10] sm:$0xff]
    %v1167 = vld [vmem:[%s1163 + $0x18] sm:$0xff]
    %s1168 = scalar_lea.vmem [#allocation5], 1
    %v1169 = vld [vmem:[%s1168] sm:$0x1]
    %v1171 = vperm.slane %v1169, 0
    %v1174 = vsel %vm144, %v1147, 0
    %v1177 = vsel %vm144, %v1162, 0
    %1179 = vmatpush.msra.mxu0 0.0
    %1180 = vmatpush.msra.mxu0 0.0
    %1181 = vmatpush.msra.mxu0 0.0
    %1182 = vmatpush.msra.mxu0 0.0
    %1183 = vmatpush.msra.mxu0 0.0
    %1184 = vmatpush.msra.mxu0 0.0
    %1185 = vmatpush.msra.mxu0 0.0
    %1186 = vmatpush.msra.mxu0 0.0
    %1187 = vmatpush.msra.mxu0 0.0
    %1188 = vmatpush.msra.mxu0 0.0
    %1189 = vmatpush.msra.mxu0 0.0
    %1190 = vmatpush.msra.mxu0 0.0
    %1191 = vmatpush.msra.mxu0 %v1167
    %1192 = vmatpush.msra.mxu0 %v1166
    %1193 = vmatpush.msra.mxu0 %v1165
    %1194 = vmatpush.msra.mxu0 %v1164
    %1195 = vmatmul.f32.gmra.mxu0 %v1174
    %v1196 = vpop.f32.mrf.mxu0
    %v1197 = vadd.f32 %v1171, %v1196
    %1198 = vmatmul.f32.gmra.mxu0 %v1177
    %v1199 = vpop.f32.mrf.mxu0
    %v1200 = vadd.f32 %v1171, %v1199
    %1201 = vdwg.mxu0
    %v1202 = vadd.f32 %v1197, %v812
    %v1203 = vadd.f32 %v1200, %v813
    %s1204 = scalar_lea.vmem %s6, 1
    %v1205 = vld [vmem:[%s1204] sm:$0x1]
    %s1206 = scalar_lea.vmem [#allocation7], 1
    %v1207 = vld [vmem:[%s1206] sm:$0x1]
    %v1208 = vsel %vm144, %v1202, 0.0
    %1209 = vadd.xlane.f32.xlu0 %v1208
    %v1210 = vpop.xlane.xlu0 %1209
    %v1211 = vsel %vm144, %v1203, 0.0
    %1212 = vadd.xlane.f32.xlu0 %v1211
    %v1213 = vpop.xlane.xlu0 %1212
    %v1214 = vmul.f32 %v1210, %v541
    %v1215 = vmul.f32 %v1213, %v541
    %v1216 = vsub.f32 %v1202, %v1214
    %v1217 = vsub.f32 %v1203, %v1215
    %v1218 = vmul.f32 %v1216, %v1216
    %v1219 = vmul.f32 %v1217, %v1217
    %v1220 = vsel %vm144, %v1218, 0.0
    %1221 = vadd.xlane.f32.xlu0 %v1220
    %v1222 = vpop.xlane.xlu0 %1221
    %v1223 = vsel %vm144, %v1219, 0.0
    %1224 = vadd.xlane.f32.xlu0 %v1223
    %v1225 = vpop.xlane.xlu0 %1224
    %v1226 = vmul.f32 %v1222, %v541
    %v1227 = vmul.f32 %v1225, %v541
    %v1228 = vadd.f32 %v1226, 1e-12
    %v1229 = vadd.f32 %v1227, 1e-12
    %v1230 = vrsqrt.pop %v1228
    %v1231 = vmul.f32 %v1230, %v1228
    %v1232 = vmul.f32 %v1231, %v1230
    %v1233 = vmul.f32 0.5, %v1232
    %v1234 = vsub.f32 1.5, %v1233
    %v1235 = vmul.f32 %v1230, %v1234
    %vm1236 = vweird.f32 %v1228
    %vm1237 = vweird.f32 %v1230
    %vm1238 = vmor %vm1236, %vm1237
    %v1239 = vsel %vm1238, %v1230, %v1235
    %v1240 = vrsqrt.pop %v1229
    %v1241 = vmul.f32 %v1240, %v1229
    %v1242 = vmul.f32 %v1241, %v1240
    %v1243 = vmul.f32 0.5, %v1242
    %v1244 = vsub.f32 1.5, %v1243
    %v1245 = vmul.f32 %v1240, %v1244
    %vm1246 = vweird.f32 %v1229
    %vm1247 = vweird.f32 %v1240
    %vm1248 = vmor %vm1246, %vm1247
    %v1249 = vsel %vm1248, %v1240, %v1245
    %v1250 = vmul.f32 %v1216, %v1239
    %v1251 = vmul.f32 %v1217, %v1249
    %v1253 = vperm.slane %v1205, 0
    %v1255 = vmul.f32 %v1250, %v1253
    %v1256 = vmul.f32 %v1251, %v1253
    %v1258 = vperm.slane %v1207, 0
    %v1260 = vadd.f32 %v1255, %v1258
    %v1261 = vadd.f32 %v1256, %v1258
    %s1262 = scalar_lea.vmem [#allocation8], 32
    %v1263 = vld [vmem:[%s1262] sm:$0xff]
    %v1264 = vld [vmem:[%s1262 + $0x8] sm:$0xff]
    %v1265 = vld [vmem:[%s1262 + $0x10] sm:$0xff]
    %v1266 = vld [vmem:[%s1262 + $0x18] sm:$0xff]
    %s1267 = scalar_lea.vmem %s9, 1
    %v1268 = vld [vmem:[%s1267] sm:$0x1]
    %v1270 = vperm.slane %v1268, 0
    %v1273 = vsel %vm144, %v1260, 0
    %v1276 = vsel %vm144, %v1261, 0
    %1278 = vmatpush.msra.mxu0 0.0
    %1279 = vmatpush.msra.mxu0 0.0
    %1280 = vmatpush.msra.mxu0 0.0
    %1281 = vmatpush.msra.mxu0 0.0
    %1282 = vmatpush.msra.mxu0 0.0
    %1283 = vmatpush.msra.mxu0 0.0
    %1284 = vmatpush.msra.mxu0 0.0
    %1285 = vmatpush.msra.mxu0 0.0
    %1286 = vmatpush.msra.mxu0 0.0
    %1287 = vmatpush.msra.mxu0 0.0
    %1288 = vmatpush.msra.mxu0 0.0
    %1289 = vmatpush.msra.mxu0 0.0
    %1290 = vmatpush.msra.mxu0 %v1266
    %1291 = vmatpush.msra.mxu0 %v1265
    %1292 = vmatpush.msra.mxu0 %v1264
    %1293 = vmatpush.msra.mxu0 %v1263
    %1294 = vmatmul.f32.gmra.mxu0 %v1273
    %v1295 = vpop.f32.mrf.mxu0
    %v1296 = vadd.f32 %v1270, %v1295
    %1297 = vmatmul.f32.gmra.mxu0 %v1276
    %v1298 = vpop.f32.mrf.mxu0
    %v1299 = vadd.f32 %v1270, %v1298
    %1300 = vdwg.mxu0
    %v1301 = vmul.f32 %v1296, 0.5
    %v1302 = vmul.f32 %v1299, 0.5
    %v1303 = vmul.f32 %v1296, 0.70710677
    %v1304 = vmul.f32 %v1299, 0.70710677
    %v1305 = vmul.f32 %v1303, %v1303
    %v1306 = vmin.f32 16.0, %v1305
    %v1307 = vmul.f32 %v1306, 2.1237322e-06
    %v1308 = vadd.f32 %v1307, 0.00028619796
    %v1309 = vmul.f32 %v1306, %v1308
    %v1310 = vadd.f32 %v1309, 0.0036580483
    %v1311 = vmul.f32 %v1306, %v1310
    %v1312 = vadd.f32 %v1311, 0.05243302
    %v1313 = vmul.f32 %v1306, %v1312
    %v1314 = vadd.f32 %v1313, 0.18741608
    %v1315 = vmul.f32 %v1306, %v1314
    %v1316 = vadd.f32 %v1315, 1.1283791
    %v1317 = vmul.f32 %v1303, %v1316
    %v1318 = vmul.f32 %v1306, 3.8918573e-05
    %v1319 = vadd.f32 %v1318, 0.001143296
    %v1320 = vmul.f32 %v1306, %v1319
    %v1321 = vadd.f32 %v1320, 0.014752088
    %v1322 = vmul.f32 %v1306, %v1321
    %v1323 = vadd.f32 %v1322, 0.112945676
    %v1324 = vmul.f32 %v1306, %v1323
    %v1325 = vadd.f32 %v1324, 0.4994258
    %v1326 = vmul.f32 %v1306, %v1325
    %v1327 = vadd.f32 %v1326, 1.0
    %v1328 = vrcp.pop %v1327
    %v1329 = vmul.f32 %v1327, %v1328
    %v1330 = vsub.f32 1.0, %v1329
    %v1331 = vmul.f32 %v1328, %v1330
    %v1332 = vadd.f32 %v1328, %v1331
    %vm1333 = vweird.f32 %v1327
    %vm1334 = vweird.f32 %v1328
    %vm1335 = vmor %vm1333, %vm1334
    %v1336 = vsel %vm1335, %v1328, %v1332
    %v1337 = vand.u32 2147483647, %v1327
    %vm1338 = vcmp.eq.f32.partialorder %v1337, 8.507059e+37
    %v1339 = vand.u32 %v1327, 2147483648
    %v1340 = vor.u32 1.1754944e-38, %v1339
    %v1341 = vsel %vm1338, %v1340, %v1336
    %v1342 = vmul.f32 %v1317, %v1341
    %v1343 = vmin.f32 %v1342, 1.0
    %v1344 = vmax.f32 %v1343, -1.0
    %v1345 = vmul.f32 %v1304, %v1304
    %v1346 = vmin.f32 16.0, %v1345
    %v1347 = vmul.f32 %v1346, 2.1237322e-06
    %v1348 = vadd.f32 %v1347, 0.00028619796
    %v1349 = vmul.f32 %v1346, %v1348
    %v1350 = vadd.f32 %v1349, 0.0036580483
    %v1351 = vmul.f32 %v1346, %v1350
    %v1352 = vadd.f32 %v1351, 0.05243302
    %v1353 = vmul.f32 %v1346, %v1352
    %v1354 = vadd.f32 %v1353, 0.18741608
    %v1355 = vmul.f32 %v1346, %v1354
    %v1356 = vadd.f32 %v1355, 1.1283791
    %v1357 = vmul.f32 %v1304, %v1356
    %v1358 = vmul.f32 %v1346, 3.8918573e-05
    %v1359 = vadd.f32 %v1358, 0.001143296
    %v1360 = vmul.f32 %v1346, %v1359
    %v1361 = vadd.f32 %v1360, 0.014752088
    %v1362 = vmul.f32 %v1346, %v1361
    %v1363 = vadd.f32 %v1362, 0.112945676
    %v1364 = vmul.f32 %v1346, %v1363
    %v1365 = vadd.f32 %v1364, 0.4994258
    %v1366 = vmul.f32 %v1346, %v1365
    %v1367 = vadd.f32 %v1366, 1.0
    %v1368 = vrcp.pop %v1367
    %v1369 = vmul.f32 %v1367, %v1368
    %v1370 = vsub.f32 1.0, %v1369
    %v1371 = vmul.f32 %v1368, %v1370
    %v1372 = vadd.f32 %v1368, %v1371
    %vm1373 = vweird.f32 %v1367
    %vm1374 = vweird.f32 %v1368
    %vm1375 = vmor %vm1373, %vm1374
    %v1376 = vsel %vm1375, %v1368, %v1372
    %v1377 = vand.u32 2147483647, %v1367
    %vm1378 = vcmp.eq.f32.partialorder %v1377, 8.507059e+37
    %v1379 = vand.u32 %v1367, 2147483648
    %v1380 = vor.u32 1.1754944e-38, %v1379
    %v1381 = vsel %vm1378, %v1380, %v1376
    %v1382 = vmul.f32 %v1357, %v1381
    %v1383 = vmin.f32 %v1382, 1.0
    %v1384 = vmax.f32 %v1383, -1.0
    %v1385 = vadd.f32 %v1344, 1.0
    %v1386 = vadd.f32 %v1384, 1.0
    %v1387 = vmul.f32 %v1301, %v1385
    %v1388 = vmul.f32 %v1302, %v1386
    %s1389 = scalar_lea.vmem %s10, 64
    %v1390 = vld [vmem:[%s1389] sm:$0xff]
    %v1391 = vld [vmem:[%s1389 + $0x8] sm:$0xff]
    %v1392 = vld [vmem:[%s1389 + $0x10] sm:$0xff]
    %v1393 = vld [vmem:[%s1389 + $0x18] sm:$0xff]
    %v1394 = vld [vmem:[%s1389 + $0x20] sm:$0xff]
    %v1395 = vld [vmem:[%s1389 + $0x28] sm:$0xff]
    %v1396 = vld [vmem:[%s1389 + $0x30] sm:$0xff]
    %v1397 = vld [vmem:[%s1389 + $0x38] sm:$0xff]
    %s1398 = scalar_lea.vmem %s11, 1
    %v1399 = vld [vmem:[%s1398] sm:$0x1]
    %v1401 = vperm.slane %v1399, 0
    %v1404 = vsel %vm278, %v1387, 0
    %v1407 = vsel %vm278, %v1388, 0
    %1409 = vmatpush.msra.mxu0 0.0
    %1410 = vmatpush.msra.mxu0 0.0
    %1411 = vmatpush.msra.mxu0 0.0
    %1412 = vmatpush.msra.mxu0 0.0
    %1413 = vmatpush.msra.mxu0 0.0
    %1414 = vmatpush.msra.mxu0 0.0
    %1415 = vmatpush.msra.mxu0 0.0
    %1416 = vmatpush.msra.mxu0 0.0
    %1417 = vmatpush.msra.mxu0 %v1397
    %1418 = vmatpush.msra.mxu0 %v1396
    %1419 = vmatpush.msra.mxu0 %v1395
    %1420 = vmatpush.msra.mxu0 %v1394
    %1421 = vmatpush.msra.mxu0 %v1393
    %1422 = vmatpush.msra.mxu0 %v1392
    %1423 = vmatpush.msra.mxu0 %v1391
    %1424 = vmatpush.msra.mxu0 %v1390
    %1425 = vmatmul.f32.gmra.mxu0 %v1404
    %v1426 = vpop.f32.mrf.mxu0
    %v1427 = vadd.f32 %v1401, %v1426
    %1428 = vmatmul.f32.gmra.mxu0 %v1407
    %v1429 = vpop.f32.mrf.mxu0
    %v1430 = vadd.f32 %v1401, %v1429
    %1431 = vdwg.mxu0
    %v1432 = vadd.f32 %v1427, %v1260
    %v1433 = vadd.f32 %v1430, %v1261
    %s1434 = scalar_lea.vmem %s12, 1
    %v1435 = vld [vmem:[%s1434] sm:$0x1]
    %s1436 = scalar_lea.vmem [#allocation10], 1
    %v1437 = vld [vmem:[%s1436] sm:$0x1]
    %v1438 = vsel %vm144, %v1432, 0.0
    %1439 = vadd.xlane.f32.xlu0 %v1438
    %v1440 = vpop.xlane.xlu0 %1439
    %v1441 = vsel %vm144, %v1433, 0.0
    %1442 = vadd.xlane.f32.xlu0 %v1441
    %v1443 = vpop.xlane.xlu0 %1442
    %v1444 = vmul.f32 %v1440, %v541
    %v1445 = vmul.f32 %v1443, %v541
    %v1446 = vsub.f32 %v1432, %v1444
    %v1447 = vsub.f32 %v1433, %v1445
    %v1448 = vmul.f32 %v1446, %v1446
    %v1449 = vmul.f32 %v1447, %v1447
    %v1450 = vsel %vm144, %v1448, 0.0
    %1451 = vadd.xlane.f32.xlu0 %v1450
    %v1452 = vpop.xlane.xlu0 %1451
    %v1453 = vsel %vm144, %v1449, 0.0
    %1454 = vadd.xlane.f32.xlu0 %v1453
    %v1455 = vpop.xlane.xlu0 %1454
    %v1456 = vmul.f32 %v1452, %v541
    %v1457 = vmul.f32 %v1455, %v541
    %v1458 = vadd.f32 %v1456, 1e-12
    %v1459 = vadd.f32 %v1457, 1e-12
    %v1460 = vrsqrt.pop %v1458
    %v1461 = vmul.f32 %v1460, %v1458
    %v1462 = vmul.f32 %v1461, %v1460
    %v1463 = vmul.f32 0.5, %v1462
    %v1464 = vsub.f32 1.5, %v1463
    %v1465 = vmul.f32 %v1460, %v1464
    %vm1466 = vweird.f32 %v1458
    %vm1467 = vweird.f32 %v1460
    %vm1468 = vmor %vm1466, %vm1467
    %v1469 = vsel %vm1468, %v1460, %v1465
    %v1470 = vrsqrt.pop %v1459
    %v1471 = vmul.f32 %v1470, %v1459
    %v1472 = vmul.f32 %v1471, %v1470
    %v1473 = vmul.f32 0.5, %v1472
    %v1474 = vsub.f32 1.5, %v1473
    %v1475 = vmul.f32 %v1470, %v1474
    %vm1476 = vweird.f32 %v1459
    %vm1477 = vweird.f32 %v1470
    %vm1478 = vmor %vm1476, %vm1477
    %v1479 = vsel %vm1478, %v1470, %v1475
    %v1480 = vmul.f32 %v1446, %v1469
    %v1481 = vmul.f32 %v1447, %v1479
    %v1483 = vperm.slane %v1435, 0
    %v1485 = vmul.f32 %v1480, %v1483
    %v1486 = vmul.f32 %v1481, %v1483
    %v1488 = vperm.slane %v1437, 0
    %v1490 = vadd.f32 %v1485, %v1488
    %v1491 = vadd.f32 %v1486, %v1488
    %1492 = vst.msk [vmem:[#allocation11] sm:$0xff] %vm144, %v1490
    %1493 = vst.msk [vmem:[#allocation11 + $0x8] sm:$0xff] %vm144, %v1491
    // Predicated region
    $region78: #{tpu_custom_call.1} parent=1 // pred_check
      _
    $region79: #{tpu_custom_call.1} parent=1 // pred_check_branch
      %1495 = sbr.rel (0) target = $region81
    $region80: #{tpu_custom_call.1} parent=1 // pred_region
      %1497 = vsyncadd [#allocation4], 0
      %s1498 = sshll.u32 [#allocation11], 4
      %s1499 = int_to_ptr.vmem [resolvable:$true] %s1498
      %s1500 = sshll.u32 %s14, 4
      %s1501 = int_to_ptr.hbm [resolvable:$true] %s1500
      %1506 = dma.vmem_to_hbm [thread:$0]  %s1499, 256, %s1501, [#allocation4], 128, 128, 8
    $region81: #{tpu_custom_call.1} parent=1 // pred_fallthru
      _
    // Predicated region
    $region82: #{tpu_custom_call.1} parent=1 // pred_check
      _
    $region83: #{tpu_custom_call.1} parent=1 // pred_check_branch
      %1508 = sbr.rel (0) target = $region85
    $region84: #{tpu_custom_call.1} parent=1 // pred_region
      %1510 = dma.done [#allocation4], 256
    $region85: #{tpu_custom_call.1} parent=1 // pred_fallthru
      _
    %1511 = vsyncpa [#allocation3], 1
    %1512 = vsyncpa [#allocation6], 1
    %1513 = vsyncpa [#allocation9], 1
    %1514 = vsyncpa [#allocation4], 1

</llo_original>
